<compile_context>
chip_gen: v5e
topology: v5e:2x2
jax: 0.10.0
libtpu: 0.0.40
codegen_flags: <defaults>
</compile_context>

<pallas_src>
import functools
import numpy as np
import jax
import jax.numpy as jnp
from jax import lax
from jax.experimental import pallas as pl
from jax.experimental.pallas import tpu as pltpu


def _mha_kernel(n_head, d_k, d_v, inv_temp, eps, cdt, emit_attn,
                xq_ref, xk_ref, xv_ref, mask_ref,
                wq_ref, bq_ref, wk_ref, bk_ref, wv_ref, bv_ref,
                wfc_ref, bfc_ref, g_ref, beta_ref,
                *out_and_scratch):
    if emit_attn:
        out_ref, attn_ref, k_sc, v_sc = out_and_scratch
    else:
        (out_ref, k_sc, v_sc), attn_ref = out_and_scratch, None

    f32 = jnp.float32

    # ---- K/V projection: hoisted out of the q-tile loop. Computed only on the
    # first q tile of each batch (inner grid axis is "arbitrary", so the scratch
    # carry across q tiles is valid) and reused by all subsequent q tiles.
    @pl.when(pl.program_id(1) == 0)
    def _project_kv():
        xk = xk_ref[0]                                            # (SK, D)
        xv = xv_ref[0]                                            # (SK, D)
        k_t = lax.dot_general(wk_ref[...].astype(cdt), xk.astype(cdt),
                              (((1,), (1,)), ((), ())),
                              preferred_element_type=f32) + bk_ref[...]   # (H*dk, SK)
        v_t = lax.dot_general(wv_ref[...].astype(cdt), xv.astype(cdt),
                              (((1,), (1,)), ((), ())),
                              preferred_element_type=f32) + bv_ref[...]   # (H*dv, SK)
        # Head split along the leading (major) axis: sublane-tile aligned, no
        # lane shuffles.
        k_sc[...] = k_t.reshape(n_head, d_k, k_t.shape[1])
        v_sc[...] = v_t.reshape(n_head, d_v, v_t.shape[1])

    xq = xq_ref[0]                                                # (TQ, D), also residual
    tq = xq.shape[0]

    # Q projection for this tile; 1/temperature folded in once (scales Wq*x + bq,
    # equivalent to torch's attn / temperature).
    q_t = (lax.dot_general(wq_ref[...].astype(cdt), xq.astype(cdt),
                           (((1,), (1,)), ((), ())),
                           preferred_element_type=f32) + bq_ref[...]) * inv_temp
    qh = q_t.reshape(n_head, d_k, tq)                             # (H, dk, TQ)

    k3 = k_sc[...]                                                # (H, dk, SK)
    v3 = v_sc[...]                                                # (H, dv, SK)

    # Batched scores for all heads in one dot_general, contracting d_k directly
    # (no per-head transposes / stack): (H, TQ, SK).
    s = lax.dot_general(qh.astype(cdt), k3.astype(cdt),
                        (((1,), (1,)), ((0,), (0,))),
                        preferred_element_type=f32)

    # Additive mask from the int8 mask tile (finite large-negative avoids
    # -inf -> NaN on fully masked rows; masked probabilities underflow to 0).
    neg_bias = mask_ref[0].astype(f32) * jnp.float32(-1e30)       # (TQ, SK)
    s = s + neg_bias[None, :, :]

    # Softmax over keys — exact divide (correctness: rows sum to 1, and the
    # approximate-reciprocal error previously leaked into the output).
    m = jnp.max(s, axis=-1, keepdims=True)
    e = jnp.exp(s - m)
    a = e / jnp.sum(e, axis=-1, keepdims=True)                    # (H, TQ, SK), f32

    if emit_attn:
        # Torch (n_head, bs, n_q, n_k) layout straight from the out_spec.
        attn_ref[:, 0, :, :] = a.astype(attn_ref.dtype)

    # P @ V for all heads, feature-major result: (H, dv, TQ).
    o3 = lax.dot_general(v3.astype(cdt), a.astype(cdt),
                         (((2,), (2,)), ((0,), (0,))),
                         preferred_element_type=f32)
    o_t = o3.reshape(n_head * d_v, tq)                            # (H*dv, TQ), head-major merge

    # Output projection emitted directly in (TQ, D) orientation (no .T), then
    # residual + LayerNorm in f32.
    o = lax.dot_general(o_t.astype(cdt), wfc_ref[...].astype(cdt),
                        (((0,), (1,)), ((), ())),
                        preferred_element_type=f32) + bfc_ref[...]
    z = o + xq
    mu = jnp.mean(z, axis=-1, keepdims=True)
    var = jnp.mean((z - mu) ** 2, axis=-1, keepdims=True)
    z = (z - mu) * lax.rsqrt(var + eps) * g_ref[...] + beta_ref[...]
    out_ref[0] = z.astype(out_ref.dtype)


def _vmem_bytes_estimate(tq, n_k, d_model, n_head, d_k, d_v,
                         emit_attn, attn_itemsize):
    """Rough per-step VMEM footprint (double-buffered blocks + scratch + live)."""
    f4 = 4
    blocks = 2 * (tq * d_model * f4                     # q tile
                  + 2 * n_k * d_model * f4              # full-K, full-V inputs
                  + tq * n_k * 1                        # int8 mask tile
                  + tq * d_model * f4)                  # output tile
    if emit_attn:
        blocks += 2 * n_head * tq * n_k * attn_itemsize  # attn output block
    scratch = n_head * (d_k + d_v) * n_k * f4            # projected K/V carry
    weights = f4 * (n_head * (2 * d_k + d_v) * d_model   # wq, wk, wv
                    + n_head * d_v * d_model             # wfc
                    + n_head * (2 * d_k + d_v)           # bq, bk, bv
                    + 3 * d_model)                       # bfc, gamma, beta
    live = 4 * n_head * tq * n_k * f4                     # s / e / a / o intermediates
    return blocks + scratch + weights + live


def multi_head_attention_pallas(q_in, k_in, v_in, mask, params, *,
                                n_head, d_k, d_v,
                                compute_dtype=jnp.bfloat16,
                                return_attn=True,
                                attn_dtype=jnp.float32):
    bs, n_q, d_model = q_in.shape
    _, n_k, _ = k_in.shape
    _, n_v, _ = v_in.shape
    assert n_k == n_v
    inv_temp = float(1.0 / np.sqrt(d_k))
    eps = 1e-5

    # Mask as int8 (4x less HBM than f32); upcast in-kernel.
    mask_i8 = (jnp.zeros((bs, n_q, n_k), jnp.int8) if mask is None
               else mask.astype(jnp.int8))

    # q-tile size: biggest 128-multiple whose working set fits a conservative
    # budget (also safe on v7x's 64 MiB VMEM); otherwise the full (small) n_q.
    attn_itemsize = jnp.dtype(attn_dtype).itemsize
    budget = 40 * 1024 * 1024
    tq = n_q
    for cand in (512, 256, 128):
        if n_q % cand == 0 and _vmem_bytes_estimate(
                cand, n_k, d_model, n_head, d_k, d_v,
                return_attn, attn_itemsize) <= budget:
            tq = cand
            break
    num_q_tiles = n_q // tq
    est = _vmem_bytes_estimate(tq, n_k, d_model, n_head, d_k, d_v,
                               return_attn, attn_itemsize)
    vmem_limit = int(min(60 * 1024 * 1024, max(32 * 1024 * 1024, 2 * est)))

    kernel = functools.partial(_mha_kernel, n_head, d_k, d_v, inv_temp, eps,
                               compute_dtype, return_attn)

    def resident(shape):
        # Constant index_map => block never changes => stays VMEM-resident.
        return pl.BlockSpec(shape, lambda b, qi, _n=len(shape): (0,) * _n)

    param_order = ('wq', 'bq', 'wk', 'bk', 'wv', 'bv', 'wfc', 'bfc', 'g', 'beta')
    param_args = [params[n] for n in param_order]
    param_specs = [resident(params[n].shape) for n in param_order]

    out_spec = pl.BlockSpec((1, tq, d_model), lambda b, qi: (b, qi, 0))
    if return_attn:
        out_shape = (jax.ShapeDtypeStruct((bs, n_q, d_model), q_in.dtype),
                     jax.ShapeDtypeStruct((n_head, bs, n_q, n_k), attn_dtype))
        out_specs = (out_spec,
                     pl.BlockSpec((n_head, 1, tq, n_k), lambda b, qi: (0, b, qi, 0)))
    else:
        out_shape = jax.ShapeDtypeStruct((bs, n_q, d_model), q_in.dtype)
        out_specs = out_spec

    result = pl.pallas_call(
        kernel,
        out_shape=out_shape,
        grid=(bs, num_q_tiles),
        in_specs=[
            pl.BlockSpec((1, tq, d_model), lambda b, qi: (b, qi, 0)),   # q tile
            pl.BlockSpec((1, n_k, d_model), lambda b, qi: (b, 0, 0)),   # full k
            pl.BlockSpec((1, n_k, d_model), lambda b, qi: (b, 0, 0)),   # full v
            pl.BlockSpec((1, tq, n_k), lambda b, qi: (b, qi, 0)),       # mask tile (int8)
        ] + param_specs,
        out_specs=out_specs,
        scratch_shapes=[
            pltpu.VMEM((n_head, d_k, n_k), jnp.float32),   # projected K carry
            pltpu.VMEM((n_head, d_v, n_k), jnp.float32),   # projected V carry
        ],
        compiler_params=pltpu.CompilerParams(
            # Batch parallel (megacore / dual-TC); q-tile axis sequential so the
            # K/V-projection scratch carry across q tiles is valid.
            dimension_semantics=("parallel", "arbitrary"),
            vmem_limit_bytes=vmem_limit),
    )(q_in, k_in, v_in, mask_i8, *param_args)

    if return_attn:
        out, attn = result
        # Torch layout (n_head*bs, n_q, n_k), index h*bs + b: free leading-dim reshape.
        return out, attn.reshape(n_head * bs, n_q, n_k)
    return result, None


def mha_ref(q_in, k_in, v_in, mask, p, *, n_head, d_k, d_v):
    """Plain-JAX reference mirroring the PyTorch forward (dropout = identity)."""
    bs, n_q, d_model = q_in.shape
    _, n_k, _ = k_in.shape
    temperature = np.sqrt(d_k)
    q = q_in @ p['wq'].T + p['bq'][:, 0]
    k = k_in @ p['wk'].T + p['bk'][:, 0]
    v = v_in @ p['wv'].T + p['bv'][:, 0]
    qh = q.reshape(bs, n_q, n_head, d_k).transpose(2, 0, 1, 3).reshape(-1, n_q, d_k)
    kh = k.reshape(bs, n_k, n_head, d_k).transpose(2, 0, 1, 3).reshape(-1, n_k, d_k)
    vh = v.reshape(bs, n_k, n_head, d_v).transpose(2, 0, 1, 3).reshape(-1, n_k, d_v)
    attn = jnp.einsum('bqd,bkd->bqk', qh, kh) / temperature
    if mask is not None:
        attn = jnp.where(jnp.tile(mask, (n_head, 1, 1)), -jnp.inf, attn)
    attn = jax.nn.softmax(attn, axis=2)
    o = jnp.einsum('bqk,bkd->bqd', attn, vh)
    o = o.reshape(n_head, bs, n_q, d_v).transpose(1, 2, 0, 3).reshape(bs, n_q, -1)
    o = o @ p['wfc'].T + p['bfc'][0]
    z = o + q_in
    mu = jnp.mean(z, axis=-1, keepdims=True)
    var = jnp.mean((z - mu) ** 2, axis=-1, keepdims=True)
    z = (z - mu) * jax.lax.rsqrt(var + 1e-5) * p['g'][0] + p['beta'][0]
    return z, attn


def make_params(key, d_model, n_head, d_k, d_v):
    """Torch-native layouts: Linear weights are (out_features, in_features)."""
    ks = jax.random.split(key, 8)
    f32 = jnp.float32
    std_qk = np.sqrt(2.0 / (d_model + d_k))
    std_v = np.sqrt(2.0 / (d_model + d_v))
    std_fc = np.sqrt(2.0 / (n_head * d_v + d_model))   # xavier_normal
    return {
        'wq': jax.random.normal(ks[0], (n_head * d_k, d_model), f32) * std_qk,
        'bq': jax.random.normal(ks[1], (n_head * d_k, 1), f32) * 0.02,
        'wk': jax.random.normal(ks[2], (n_head * d_k, d_model), f32) * std_qk,
        'bk': jax.random.normal(ks[3], (n_head * d_k, 1), f32) * 0.02,
        'wv': jax.random.normal(ks[4], (n_head * d_v, d_model), f32) * std_v,
        'bv': jax.random.normal(ks[5], (n_head * d_v, 1), f32) * 0.02,
        'wfc': jax.random.normal(ks[6], (d_model, n_head * d_v), f32) * std_fc,
        'bfc': jax.random.normal(ks[7], (1, d_model), f32) * 0.02,
        'g': jnp.ones((1, d_model), f32),
        'beta': jnp.zeros((1, d_model), f32),
    }


if __name__ == "__main__":
    bs, S, d_model = 2, 8, 32
    n_head, d_k, d_v = 4, 8, 8

    root = jax.random.PRNGKey(0)
    k_x, k_p = jax.random.split(root)
    x = jax.random.normal(k_x, (bs, S, d_model), jnp.float32)
    params = make_params(k_p, d_model, n_head, d_k, d_v)

    # Causal mask: True above the diagonal => masked (matches masked_fill semantics).
    mask = jnp.broadcast_to(jnp.triu(jnp.ones((S, S), jnp.bool_), k=1), (bs, S, S))

    out_r, attn_r = mha_ref(x, x, x, mask, params, n_head=n_head, d_k=d_k, d_v=d_v)

    # f32 compute path: correctness check (exact softmax divide; no approx recip).
    out, attn = multi_head_attention_pallas(x, x, x, mask, params,
                                            n_head=n_head, d_k=d_k, d_v=d_v,
                                            compute_dtype=jnp.float32)
    jax.block_until_ready((out, attn))
    assert out.shape == (bs, S, d_model)
    assert attn.shape == (n_head * bs, S, S)
    # Tolerance leaves headroom for generation-dependent MXU f32 pass behaviour.
    np.testing.assert_allclose(np.asarray(out), np.asarray(out_r), rtol=2e-2, atol=2e-2)
    np.testing.assert_allclose(np.asarray(attn), np.asarray(attn_r), rtol=2e-2, atol=2e-2)

    # Default bf16 MXU path (perf review), attn writeback skipped entirely.
    out_bf, _ = multi_head_attention_pallas(x, x, x, mask, params,
                                            n_head=n_head, d_k=d_k, d_v=d_v,
                                            return_attn=False)
    jax.block_until_ready(out_bf)
    assert out_bf.shape == (bs, S, d_model)
    assert np.isfinite(np.asarray(out_bf)).all()
    np.testing.assert_allclose(np.asarray(out_bf), np.asarray(out_r), rtol=1e-1, atol=1e-1)

    print("KERNEL_OK")
</pallas_src>

<mosaic_0001>
module attributes {stable_mosaic.version = 11 : i64} {
  func.func @_mha_kernel(%arg0: i32, %arg1: i32, %arg2: memref<1x8x32xf32, #tpu.memory_space<vmem>>, %arg3: memref<1x8x32xf32, #tpu.memory_space<vmem>>, %arg4: memref<1x8x32xf32, #tpu.memory_space<vmem>>, %arg5: memref<1x8x8xi8, #tpu.memory_space<vmem>>, %arg6: memref<32x32xf32, #tpu.memory_space<vmem>>, %arg7: memref<32x1xf32, #tpu.memory_space<vmem>>, %arg8: memref<32x32xf32, #tpu.memory_space<vmem>>, %arg9: memref<32x1xf32, #tpu.memory_space<vmem>>, %arg10: memref<32x32xf32, #tpu.memory_space<vmem>>, %arg11: memref<32x1xf32, #tpu.memory_space<vmem>>, %arg12: memref<32x32xf32, #tpu.memory_space<vmem>>, %arg13: memref<1x32xf32, #tpu.memory_space<vmem>>, %arg14: memref<1x32xf32, #tpu.memory_space<vmem>>, %arg15: memref<1x32xf32, #tpu.memory_space<vmem>>, %arg16: memref<1x8x32xf32, #tpu.memory_space<vmem>>, %arg17: memref<4x1x8x8xf32, #tpu.memory_space<vmem>>, %arg18: memref<4x8x8xf32, #tpu.memory_space<vmem>>, %arg19: memref<4x8x8xf32, #tpu.memory_space<vmem>>) attributes {dimension_semantics = [#tpu.dimension_semantics<parallel>, #tpu.dimension_semantics<arbitrary>], iteration_bounds = array<i64: 2, 1>, scalar_prefetch = 0 : i64, scratch_operands = 2 : i64, tpu.core_type = #tpu.core_type<tc>, window_params = [{transform_indices = @transform_0, window_bounds = array<i64: 1, 8, 32>}, {transform_indices = @transform_1, window_bounds = array<i64: 1, 8, 32>}, {transform_indices = @transform_2, window_bounds = array<i64: 1, 8, 32>}, {transform_indices = @transform_3, window_bounds = array<i64: 1, 8, 8>}, {pipeline_mode = #tpu.pipeline_mode<synchronous>, transform_indices = @transform_4, window_bounds = array<i64: 32, 32>}, {pipeline_mode = #tpu.pipeline_mode<synchronous>, transform_indices = @transform_5, window_bounds = array<i64: 32, 1>}, {pipeline_mode = #tpu.pipeline_mode<synchronous>, transform_indices = @transform_6, window_bounds = array<i64: 32, 32>}, {pipeline_mode = #tpu.pipeline_mode<synchronous>, transform_indices = @transform_7, window_bounds = array<i64: 32, 1>}, {pipeline_mode = #tpu.pipeline_mode<synchronous>, transform_indices = @transform_8, window_bounds = array<i64: 32, 32>}, {pipeline_mode = #tpu.pipeline_mode<synchronous>, transform_indices = @transform_9, window_bounds = array<i64: 32, 1>}, {pipeline_mode = #tpu.pipeline_mode<synchronous>, transform_indices = @transform_10, window_bounds = array<i64: 32, 32>}, {pipeline_mode = #tpu.pipeline_mode<synchronous>, transform_indices = @transform_11, window_bounds = array<i64: 1, 32>}, {pipeline_mode = #tpu.pipeline_mode<synchronous>, transform_indices = @transform_12, window_bounds = array<i64: 1, 32>}, {pipeline_mode = #tpu.pipeline_mode<synchronous>, transform_indices = @transform_13, window_bounds = array<i64: 1, 32>}, {transform_indices = @transform_14, window_bounds = array<i64: 1, 8, 32>}, {transform_indices = @transform_15, window_bounds = array<i64: 4, 1, 8, 8>}]} {
    %c0_i32 = arith.constant 0 : i32
    %0 = arith.cmpi eq, %arg1, %c0_i32 : i32
    %1 = arith.extui %0 : i1 to i32
    %c0_i32_0 = arith.constant 0 : i32
    %2 = arith.cmpi ne, %1, %c0_i32_0 : i32
    scf.if %2 {
      %c0_43 = arith.constant 0 : index
      %c0_44 = arith.constant 0 : index
      %c0_45 = arith.constant 0 : index
      %71 = vector.load %arg3[%c0_43, %c0_44, %c0_45] : memref<1x8x32xf32, #tpu.memory_space<vmem>>, vector<1x8x32xf32>
      %72 = vector.shape_cast %71 : vector<1x8x32xf32> to vector<8x32xf32>
      %c0_46 = arith.constant 0 : index
      %c0_47 = arith.constant 0 : index
      %c0_48 = arith.constant 0 : index
      %73 = vector.load %arg4[%c0_46, %c0_47, %c0_48] : memref<1x8x32xf32, #tpu.memory_space<vmem>>, vector<1x8x32xf32>
      %74 = vector.shape_cast %73 : vector<1x8x32xf32> to vector<8x32xf32>
      %c0_49 = arith.constant 0 : index
      %c0_50 = arith.constant 0 : index
      %75 = vector.load %arg8[%c0_49, %c0_50] : memref<32x32xf32, #tpu.memory_space<vmem>>, vector<32x32xf32>
      %cst_51 = arith.constant dense<0.000000e+00> : vector<32x8xf32>
      %76 = tpu.matmul %75, %72, %cst_51 {dimension_numbers = #tpu.dot_dimension_numbers<[1], [1], [0], [0], [0, 0, 1, 0], [], []>} : vector<32x32xf32>, vector<8x32xf32>, vector<32x8xf32> -> vector<32x8xf32>
      %c0_52 = arith.constant 0 : index
      %c0_53 = arith.constant 0 : index
      %77 = vector.load %arg9[%c0_52, %c0_53] : memref<32x1xf32, #tpu.memory_space<vmem>>, vector<32x1xf32>
      %78 = vector.broadcast %77 : vector<32x1xf32> to vector<32x8xf32>
      %79 = arith.addf %76, %78 : vector<32x8xf32>
      %c0_54 = arith.constant 0 : index
      %c0_55 = arith.constant 0 : index
      %80 = vector.load %arg10[%c0_54, %c0_55] : memref<32x32xf32, #tpu.memory_space<vmem>>, vector<32x32xf32>
      %cst_56 = arith.constant dense<0.000000e+00> : vector<32x8xf32>
      %81 = tpu.matmul %80, %74, %cst_56 {dimension_numbers = #tpu.dot_dimension_numbers<[1], [1], [0], [0], [0, 0, 1, 0], [], []>} : vector<32x32xf32>, vector<8x32xf32>, vector<32x8xf32> -> vector<32x8xf32>
      %c0_57 = arith.constant 0 : index
      %c0_58 = arith.constant 0 : index
      %82 = vector.load %arg11[%c0_57, %c0_58] : memref<32x1xf32, #tpu.memory_space<vmem>>, vector<32x1xf32>
      %83 = vector.broadcast %82 : vector<32x1xf32> to vector<32x8xf32>
      %84 = arith.addf %81, %83 : vector<32x8xf32>
      %85 = vector.shape_cast %79 : vector<32x8xf32> to vector<4x8x8xf32>
      %c0_59 = arith.constant 0 : index
      %c0_60 = arith.constant 0 : index
      %c0_61 = arith.constant 0 : index
      %86 = vector.load %arg18[%c0_59, %c0_60, %c0_61] : memref<4x8x8xf32, #tpu.memory_space<vmem>>, vector<4x8x8xf32>
      tpu.vector_store %arg18[%c0_59, %c0_60, %c0_61], %85 {strides = array<i32>} : memref<4x8x8xf32, #tpu.memory_space<vmem>>, vector<4x8x8xf32>,
      %87 = vector.shape_cast %84 : vector<32x8xf32> to vector<4x8x8xf32>
      %c0_62 = arith.constant 0 : index
      %c0_63 = arith.constant 0 : index
      %c0_64 = arith.constant 0 : index
      %88 = vector.load %arg19[%c0_62, %c0_63, %c0_64] : memref<4x8x8xf32, #tpu.memory_space<vmem>>, vector<4x8x8xf32>
      tpu.vector_store %arg19[%c0_62, %c0_63, %c0_64], %87 {strides = array<i32>} : memref<4x8x8xf32, #tpu.memory_space<vmem>>, vector<4x8x8xf32>,
    } else {
    }
    %c0 = arith.constant 0 : index
    %c0_1 = arith.constant 0 : index
    %c0_2 = arith.constant 0 : index
    %3 = vector.load %arg2[%c0, %c0_1, %c0_2] : memref<1x8x32xf32, #tpu.memory_space<vmem>>, vector<1x8x32xf32>
    %4 = vector.shape_cast %3 : vector<1x8x32xf32> to vector<8x32xf32>
    %c0_3 = arith.constant 0 : index
    %c0_4 = arith.constant 0 : index
    %5 = vector.load %arg6[%c0_3, %c0_4] : memref<32x32xf32, #tpu.memory_space<vmem>>, vector<32x32xf32>
    %cst = arith.constant dense<0.000000e+00> : vector<32x8xf32>
    %6 = tpu.matmul %5, %4, %cst {dimension_numbers = #tpu.dot_dimension_numbers<[1], [1], [0], [0], [0, 0, 1, 0], [], []>} : vector<32x32xf32>, vector<8x32xf32>, vector<32x8xf32> -> vector<32x8xf32>
    %c0_5 = arith.constant 0 : index
    %c0_6 = arith.constant 0 : index
    %7 = vector.load %arg7[%c0_5, %c0_6] : memref<32x1xf32, #tpu.memory_space<vmem>>, vector<32x1xf32>
    %8 = vector.broadcast %7 : vector<32x1xf32> to vector<32x8xf32>
    %9 = arith.addf %6, %8 : vector<32x8xf32>
    %cst_7 = arith.constant 0.353553385 : f32
    %10 = vector.broadcast %cst_7 : f32 to vector<32x8xf32>
    %11 = arith.mulf %9, %10 : vector<32x8xf32>
    %12 = vector.shape_cast %11 : vector<32x8xf32> to vector<4x8x8xf32>
    %c0_8 = arith.constant 0 : index
    %c0_9 = arith.constant 0 : index
    %c0_10 = arith.constant 0 : index
    %13 = vector.load %arg18[%c0_8, %c0_9, %c0_10] : memref<4x8x8xf32, #tpu.memory_space<vmem>>, vector<4x8x8xf32>
    %c0_11 = arith.constant 0 : index
    %c0_12 = arith.constant 0 : index
    %c0_13 = arith.constant 0 : index
    %14 = vector.load %arg19[%c0_11, %c0_12, %c0_13] : memref<4x8x8xf32, #tpu.memory_space<vmem>>, vector<4x8x8xf32>
    %cst_14 = arith.constant dense<0.000000e+00> : vector<4x8x8xf32>
    %15 = tpu.matmul %12, %13, %cst_14 {dimension_numbers = #tpu.dot_dimension_numbers<[1], [1], [2], [2], [0, 0, 0, 2, 1, 2], [0], [0]>} : vector<4x8x8xf32>, vector<4x8x8xf32>, vector<4x8x8xf32> -> vector<4x8x8xf32>
    %c0_15 = arith.constant 0 : index
    %c0_16 = arith.constant 0 : index
    %c0_17 = arith.constant 0 : index
    %16 = vector.load %arg5[%c0_15, %c0_16, %c0_17] : memref<1x8x8xi8, #tpu.memory_space<vmem>>, vector<1x8x8xi8>
    %17 = vector.shape_cast %16 : vector<1x8x8xi8> to vector<8x8xi8>
    %18 = arith.sitofp %17 : vector<8x8xi8> to vector<8x8xf32>
    %cst_18 = arith.constant -1.000000e+30 : f32
    %19 = vector.broadcast %cst_18 : f32 to vector<8x8xf32>
    %20 = arith.mulf %18, %19 : vector<8x8xf32>
    %21 = vector.shape_cast %20 : vector<8x8xf32> to vector<1x8x8xf32>
    %22 = vector.broadcast %21 : vector<1x8x8xf32> to vector<4x8x8xf32>
    %23 = arith.addf %15, %22 : vector<4x8x8xf32>
    %cst_19 = arith.constant dense<0xFF800000> : vector<4x8xf32>
    %24 = vector.multi_reduction <maximumf>, %23, %cst_19 [2] : vector<4x8x8xf32> to vector<4x8xf32>
    %25 = vector.shape_cast %24 : vector<4x8xf32> to vector<4x8x1xf32>
    %26 = vector.broadcast %25 : vector<4x8x1xf32> to vector<4x8x8xf32>
    %27 = arith.subf %23, %26 : vector<4x8x8xf32>
    %28 = math.exp %27 : vector<4x8x8xf32>
    %cst_20 = arith.constant dense<0.000000e+00> : vector<4x8xf32>
    %29 = vector.multi_reduction <add>, %28, %cst_20 [2] : vector<4x8x8xf32> to vector<4x8xf32>
    %30 = vector.shape_cast %29 : vector<4x8xf32> to vector<4x8x1xf32>
    %31 = vector.broadcast %30 : vector<4x8x1xf32> to vector<4x8x8xf32>
    %32 = arith.divf %28, %31 : vector<4x8x8xf32>
    %c0_21 = arith.constant 0 : index
    %c0_22 = arith.constant 0 : index
    %c0_23 = arith.constant 0 : index
    %c0_24 = arith.constant 0 : index
    %33 = vector.load %arg17[%c0_21, %c0_22, %c0_23, %c0_24] : memref<4x1x8x8xf32, #tpu.memory_space<vmem>>, vector<4x1x8x8xf32>
    %34 = vector.shape_cast %33 : vector<4x1x8x8xf32> to vector<4x8x8xf32>
    %35 = vector.shape_cast %32 : vector<4x8x8xf32> to vector<4x1x8x8xf32>
    tpu.vector_store %arg17[%c0_21, %c0_22, %c0_23, %c0_24], %35 {strides = array<i32>} : memref<4x1x8x8xf32, #tpu.memory_space<vmem>>, vector<4x1x8x8xf32>,
    %cst_25 = arith.constant dense<0.000000e+00> : vector<4x8x8xf32>
    %36 = tpu.matmul %14, %32, %cst_25 {dimension_numbers = #tpu.dot_dimension_numbers<[2], [2], [1], [1], [0, 0, 0, 1, 1, 1], [0], [0]>} : vector<4x8x8xf32>, vector<4x8x8xf32>, vector<4x8x8xf32> -> vector<4x8x8xf32>
    %37 = vector.shape_cast %36 : vector<4x8x8xf32> to vector<32x8xf32>
    %c0_26 = arith.constant 0 : index
    %c0_27 = arith.constant 0 : index
    %38 = vector.load %arg12[%c0_26, %c0_27] : memref<32x32xf32, #tpu.memory_space<vmem>>, vector<32x32xf32>
    %cst_28 = arith.constant dense<0.000000e+00> : vector<8x32xf32>
    %39 = tpu.matmul %37, %38, %cst_28 {dimension_numbers = #tpu.dot_dimension_numbers<[0], [1], [1], [0], [0, 1, 1, 0], [], []>} : vector<32x8xf32>, vector<32x32xf32>, vector<8x32xf32> -> vector<8x32xf32>
    %c0_29 = arith.constant 0 : index
    %c0_30 = arith.constant 0 : index
    %40 = vector.load %arg13[%c0_29, %c0_30] : memref<1x32xf32, #tpu.memory_space<vmem>>, vector<1x32xf32>
    %41 = vector.broadcast %40 : vector<1x32xf32> to vector<8x32xf32>
    %42 = arith.addf %39, %41 : vector<8x32xf32>
    %43 = arith.addf %42, %4 : vector<8x32xf32>
    %cst_31 = arith.constant dense<0.000000e+00> : vector<8xf32>
    %44 = vector.multi_reduction <add>, %43, %cst_31 [1] : vector<8x32xf32> to vector<8xf32>
    %45 = vector.shape_cast %44 : vector<8xf32> to vector<8x1xf32>
    %cst_32 = arith.constant 3.200000e+01 : f32
    %46 = vector.broadcast %cst_32 : f32 to vector<8x1xf32>
    %47 = arith.divf %45, %46 : vector<8x1xf32>
    %48 = vector.broadcast %47 : vector<8x1xf32> to vector<8x32xf32>
    %49 = arith.subf %43, %48 : vector<8x32xf32>
    %50 = arith.mulf %49, %49 : vector<8x32xf32>
    %cst_33 = arith.constant dense<0.000000e+00> : vector<8xf32>
    %51 = vector.multi_reduction <add>, %50, %cst_33 [1] : vector<8x32xf32> to vector<8xf32>
    %52 = vector.shape_cast %51 : vector<8xf32> to vector<8x1xf32>
    %cst_34 = arith.constant 3.200000e+01 : f32
    %53 = vector.broadcast %cst_34 : f32 to vector<8x1xf32>
    %54 = arith.divf %52, %53 : vector<8x1xf32>
    %55 = vector.broadcast %47 : vector<8x1xf32> to vector<8x32xf32>
    %56 = arith.subf %43, %55 : vector<8x32xf32>
    %cst_35 = arith.constant 9.99999974E-6 : f32
    %57 = vector.broadcast %cst_35 : f32 to vector<8x1xf32>
    %58 = arith.addf %54, %57 : vector<8x1xf32>
    %59 = math.rsqrt %58 : vector<8x1xf32>
    %60 = vector.broadcast %59 : vector<8x1xf32> to vector<8x32xf32>
    %61 = arith.mulf %56, %60 : vector<8x32xf32>
    %c0_36 = arith.constant 0 : index
    %c0_37 = arith.constant 0 : index
    %62 = vector.load %arg14[%c0_36, %c0_37] : memref<1x32xf32, #tpu.memory_space<vmem>>, vector<1x32xf32>
    %63 = vector.broadcast %62 : vector<1x32xf32> to vector<8x32xf32>
    %64 = arith.mulf %61, %63 : vector<8x32xf32>
    %c0_38 = arith.constant 0 : index
    %c0_39 = arith.constant 0 : index
    %65 = vector.load %arg15[%c0_38, %c0_39] : memref<1x32xf32, #tpu.memory_space<vmem>>, vector<1x32xf32>
    %66 = vector.broadcast %65 : vector<1x32xf32> to vector<8x32xf32>
    %67 = arith.addf %64, %66 : vector<8x32xf32>
    %c0_40 = arith.constant 0 : index
    %c0_41 = arith.constant 0 : index
    %c0_42 = arith.constant 0 : index
    %68 = vector.load %arg16[%c0_40, %c0_41, %c0_42] : memref<1x8x32xf32, #tpu.memory_space<vmem>>, vector<1x8x32xf32>
    %69 = vector.shape_cast %68 : vector<1x8x32xf32> to vector<8x32xf32>
    %70 = vector.shape_cast %67 : vector<8x32xf32> to vector<1x8x32xf32>
    tpu.vector_store %arg16[%c0_40, %c0_41, %c0_42], %70 {strides = array<i32>} : memref<1x8x32xf32, #tpu.memory_space<vmem>>, vector<1x8x32xf32>,
    return
  }
  func.func @transform_0(%arg0: i32, %arg1: i32) -> (i32, i32, i32) {
    %c0_i32 = arith.constant 0 : i32
    %c0_i32_0 = arith.constant 0 : i32
    return %arg0, %arg1, %c0_i32 : i32, i32, i32
  }
  func.func @transform_1(%arg0: i32, %arg1: i32) -> (i32, i32, i32) {
    %c0_i32 = arith.constant 0 : i32
    %c0_i32_0 = arith.constant 0 : i32
    %c0_i32_1 = arith.constant 0 : i32
    return %arg0, %c0_i32, %c0_i32_0 : i32, i32, i32
  }
  func.func @transform_2(%arg0: i32, %arg1: i32) -> (i32, i32, i32) {
    %c0_i32 = arith.constant 0 : i32
    %c0_i32_0 = arith.constant 0 : i32
    %c0_i32_1 = arith.constant 0 : i32
    return %arg0, %c0_i32, %c0_i32_0 : i32, i32, i32
  }
  func.func @transform_3(%arg0: i32, %arg1: i32) -> (i32, i32, i32) {
    %c0_i32 = arith.constant 0 : i32
    %c0_i32_0 = arith.constant 0 : i32
    return %arg0, %arg1, %c0_i32 : i32, i32, i32
  }
  func.func @transform_4(%arg0: i32, %arg1: i32) -> (i32, i32) {
    %c0_i32 = arith.constant 0 : i32
    %c0_i32_0 = arith.constant 0 : i32
    %c0_i32_1 = arith.constant 0 : i32
    return %c0_i32, %c0_i32_0 : i32, i32
  }
  func.func @transform_5(%arg0: i32, %arg1: i32) -> (i32, i32) {
    %c0_i32 = arith.constant 0 : i32
    %c0_i32_0 = arith.constant 0 : i32
    %c0_i32_1 = arith.constant 0 : i32
    return %c0_i32, %c0_i32_0 : i32, i32
  }
  func.func @transform_6(%arg0: i32, %arg1: i32) -> (i32, i32) {
    %c0_i32 = arith.constant 0 : i32
    %c0_i32_0 = arith.constant 0 : i32
    %c0_i32_1 = arith.constant 0 : i32
    return %c0_i32, %c0_i32_0 : i32, i32
  }
  func.func @transform_7(%arg0: i32, %arg1: i32) -> (i32, i32) {
    %c0_i32 = arith.constant 0 : i32
    %c0_i32_0 = arith.constant 0 : i32
    %c0_i32_1 = arith.constant 0 : i32
    return %c0_i32, %c0_i32_0 : i32, i32
  }
  func.func @transform_8(%arg0: i32, %arg1: i32) -> (i32, i32) {
    %c0_i32 = arith.constant 0 : i32
    %c0_i32_0 = arith.constant 0 : i32
    %c0_i32_1 = arith.constant 0 : i32
    return %c0_i32, %c0_i32_0 : i32, i32
  }
  func.func @transform_9(%arg0: i32, %arg1: i32) -> (i32, i32) {
    %c0_i32 = arith.constant 0 : i32
    %c0_i32_0 = arith.constant 0 : i32
    %c0_i32_1 = arith.constant 0 : i32
    return %c0_i32, %c0_i32_0 : i32, i32
  }
  func.func @transform_10(%arg0: i32, %arg1: i32) -> (i32, i32) {
    %c0_i32 = arith.constant 0 : i32
    %c0_i32_0 = arith.constant 0 : i32
    %c0_i32_1 = arith.constant 0 : i32
    return %c0_i32, %c0_i32_0 : i32, i32
  }
  func.func @transform_11(%arg0: i32, %arg1: i32) -> (i32, i32) {
    %c0_i32 = arith.constant 0 : i32
    %c0_i32_0 = arith.constant 0 : i32
    %c0_i32_1 = arith.constant 0 : i32
    return %c0_i32, %c0_i32_0 : i32, i32
  }
  func.func @transform_12(%arg0: i32, %arg1: i32) -> (i32, i32) {
    %c0_i32 = arith.constant 0 : i32
    %c0_i32_0 = arith.constant 0 : i32
    %c0_i32_1 = arith.constant 0 : i32
    return %c0_i32, %c0_i32_0 : i32, i32
  }
  func.func @transform_13(%arg0: i32, %arg1: i32) -> (i32, i32) {
    %c0_i32 = arith.constant 0 : i32
    %c0_i32_0 = arith.constant 0 : i32
    %c0_i32_1 = arith.constant 0 : i32
    return %c0_i32, %c0_i32_0 : i32, i32
  }
  func.func @transform_14(%arg0: i32, %arg1: i32) -> (i32, i32, i32) {
    %c0_i32 = arith.constant 0 : i32
    %c0_i32_0 = arith.constant 0 : i32
    return %arg0, %arg1, %c0_i32 : i32, i32, i32
  }
  func.func @transform_15(%arg0: i32, %arg1: i32) -> (i32, i32, i32, i32) {
    %c0_i32 = arith.constant 0 : i32
    %c0_i32_0 = arith.constant 0 : i32
    %c0_i32_1 = arith.constant 0 : i32
    return %c0_i32, %arg0, %arg1, %c0_i32_0 : i32, i32, i32, i32
  }
}

</mosaic_0001>

<llo_original>
// kernel: tpu_custom_call.1
$region0: #{tpu_custom_call.1}
  #allocation0 [shape = 'u32[]', space=smem, size = 0x4, offset = 0x4, fixed_abs, tag = 'smem constant byte address 0x4 - core index']
  #allocation1 [shape = 'u32[72,128]{1,0:T(1,128)}', space=vmem, size = 0x9000, scoped, tag = 'internal scratch']
  #allocation2 [shape = 'f32[4,8,8]{2,1,0:T(8,128)}', space=vmem, size = 0x4000, scoped, tag = 'scratch operand']
  #allocation3 [shape = 'f32[4,8,8]{2,1,0:T(8,128)}', space=vmem, size = 0x4000, scoped, tag = 'scratch operand']
  %s0 = inlined_call_operand.hbm [shape: f32[2,8,32], index: 0, kind: input, shape index: {}]
  %s1 = inlined_call_operand.hbm [shape: f32[2,8,32], index: 1, kind: input, shape index: {}]
  %s2 = inlined_call_operand.hbm [shape: f32[2,8,32], index: 2, kind: input, shape index: {}]
  %s3 = inlined_call_operand.hbm [shape: s8[2,8,8], index: 3, kind: input, shape index: {}]
  %s4 = inlined_call_operand.vmem [shape: f32[32,32], index: 4, kind: input, shape index: {}]
  %s5 = inlined_call_operand.vmem [shape: f32[32,1], index: 5, kind: input, shape index: {}]
  %s6 = inlined_call_operand.vmem [shape: f32[32,32], index: 6, kind: input, shape index: {}]
  %s7 = inlined_call_operand.vmem [shape: f32[32,1], index: 7, kind: input, shape index: {}]
  %s8 = inlined_call_operand.vmem [shape: f32[32,32], index: 8, kind: input, shape index: {}]
  %s9 = inlined_call_operand.vmem [shape: f32[32,1], index: 9, kind: input, shape index: {}]
  %s10 = inlined_call_operand.hbm [shape: f32[32,32], index: 10, kind: input, shape index: {}]
  %s11 = inlined_call_operand.vmem [shape: f32[1,32], index: 11, kind: input, shape index: {}]
  %s12 = inlined_call_operand.vmem [shape: f32[1,32], index: 12, kind: input, shape index: {}]
  %s13 = inlined_call_operand.vmem [shape: f32[1,32], index: 13, kind: input, shape index: {}]
  %s14 = inlined_call_operand.hbm [shape: f32[2,8,32], index: 14, kind: output, shape index: {0}]
  %s15 = inlined_call_operand.hbm [shape: f32[4,2,8,8], index: 15, kind: output, shape index: {1}]
  %16 = xla_tuple %s14, %s15
  %s17 = sld [smem:[#allocation0]]
  $region121: #{tpu_custom_call.1} parent=0
    _
  %s19 = ssub.s32 1, %s17
  %s20 = scalar_select 0, %s19, %s17
  $region1: #{tpu_custom_call.1} parent=0
    #allocation4 [shape = 'u8[8192]{0}', space=vmem, size = 0x2000, scoped, tag = 'input window, operand 0']
    #allocation5 [shape = 's32[2]{0}', space=sflag, size = 0x8, scoped, tag = 'scoped memory for tpu_custom_call.1']
    #allocation6 [shape = 's32[2]{0}', space=sflag, size = 0x8, scoped, tag = 'scoped memory for tpu_custom_call.1']
    #allocation7 [shape = 'u8[8192]{0}', space=vmem, size = 0x2000, scoped, tag = 'input window, operand 1']
    #allocation8 [shape = 's32[2]{0}', space=sflag, size = 0x8, scoped, tag = 'scoped memory for tpu_custom_call.1']
    #allocation9 [shape = 'u8[8192]{0}', space=vmem, size = 0x2000, scoped, tag = 'input window, operand 2']
    #allocation10 [shape = 'u8[2048]{0}', space=vmem, size = 0x800, scoped, tag = 'input window, operand 3']
    #allocation11 [shape = 's32[2]{0}', space=sflag, size = 0x8, scoped, tag = 'scoped memory for tpu_custom_call.1']
    #allocation12 [shape = 'u8[16384]{0}', space=vmem, size = 0x4000, scoped, tag = 'input window, operand 10, single buffered']
    #allocation13 [shape = 'u8[8192]{0}', space=vmem, size = 0x2000, scoped, tag = 'output window, operand 0']
    #allocation14 [shape = 'u8[32768]{0}', space=vmem, size = 0x8000, scoped, tag = 'output window, operand 1']
    #allocation15 [shape = 's32[2]{0}', space=sflag, size = 0x8, scoped, tag = 'scoped memory for tpu_custom_call.1']
    %21 = vsyncpa [#allocation5], 0
    %s22 = scalar_lea.sflag [#allocation5], 1
    %23 = vsyncpa %s22, 0
    %24 = vsyncpa [#allocation8], 0
    %s25 = scalar_lea.sflag [#allocation8], 1
    %26 = vsyncpa %s25, 0
    %27 = vsyncpa [#allocation11], 0
    %s28 = scalar_lea.sflag [#allocation11], 1
    %29 = vsyncpa %s28, 0
    %30 = vsyncpa [#allocation6], 0
    %s31 = scalar_lea.sflag [#allocation6], 1
    %32 = vsyncpa %s31, 0
    %33 = vsyncpa [#allocation15], 0
    %s34 = scalar_lea.sflag [#allocation15], 1
    %35 = vsyncpa %s34, 0
    loop: start=0, step=1, limit=4
    $region2: #{tpu_custom_call.1} parent=1 // loop_pre_header
      _
    $region3: #{tpu_custom_call.1} parent=1 // loop_header
      %s37 = sphi 0, %s41
      %p38 = scmp.ge.s32.totalorder %s37, 4
      %s44 = sphi 0, %s56
      %s45 = sphi 0, %s52
      %s46 = sphi 0, %s44
      %s47 = sphi 0, %s45
      %s48 = sphi 0, %s46
      %s49 = sphi 0, %s47
      %s61 = sphi 0, %s63
      %s64 = sphi 0, %s61
      %s65 = sphi 0, %s64
      %s81 = sphi 0, %s65
      %s87 = sphi 0, %s89
      %s90 = sphi 0, %s87
      %s91 = sphi 0, %s90
      %s107 = sphi 0, %s91
      %s113 = sphi 0, %s115
      %s116 = sphi 0, %s113
      %s117 = sphi 0, %s116
      %s133 = sphi 0, %s117
      %s141 = sphi 0, %s143
      %s144 = sphi 0, %s141
      %s145 = sphi 0, %s144
      %s161 = sphi 0, %s145
      %s165 = sphi 0, %s165
      %s167 = sphi 0, %s165
      %s168 = sphi 0, %s167
      %s182 = sphi 0, %s168
      %s186 = sphi 0, %s186
      %s188 = sphi 0, %s186
      %s189 = sphi 0, %s188
      %s203 = sphi 0, %s189
      %s207 = sphi 0, %s207
      %s209 = sphi 0, %s207
      %s210 = sphi 0, %s209
      %s224 = sphi 0, %s210
      %s228 = sphi 0, %s228
      %s230 = sphi 0, %s228
      %s231 = sphi 0, %s230
      %s245 = sphi 0, %s231
      %s249 = sphi 0, %s249
      %s251 = sphi 0, %s249
      %s252 = sphi 0, %s251
      %s266 = sphi 0, %s252
      %s270 = sphi 0, %s270
      %s272 = sphi 0, %s270
      %s273 = sphi 0, %s272
      %s287 = sphi 0, %s273
      %s291 = sphi 0, %s291
      %s293 = sphi 0, %s291
      %s294 = sphi 0, %s293
      %s308 = sphi 0, %s294
      %s312 = sphi 0, %s312
      %s314 = sphi 0, %s312
      %s315 = sphi 0, %s314
      %s329 = sphi 0, %s315
      %s333 = sphi 0, %s333
      %s335 = sphi 0, %s333
      %s336 = sphi 0, %s335
      %s350 = sphi 0, %s336
      %s354 = sphi 0, %s354
      %s356 = sphi 0, %s354
      %s357 = sphi 0, %s356
      %s371 = sphi 0, %s357
      %s379 = sphi 0, %s381
      %s382 = sphi 0, %s379
      %s383 = sphi 0, %s382
      %s399 = sphi 0, %s383
      %s407 = sphi 0, %s409
      %s410 = sphi 0, %s407
      %s411 = sphi 0, %s410
      %s427 = sphi 0, %s411
    $region4: #{tpu_custom_call.1} parent=1 // loop_header_branch
      %40 = sbr.rel (%p38) target = $region8
    $region5: #{tpu_custom_call.1} parent=1 // loop_body
      %s42 = ssub.s32 %s37, 1
      %s43 = ssub.s32 %s37, 2
      %s50 = sadd.s32 1, %s45
      %p51 = scmp.ge.s32.totalorder %s50, 1
      %s52 = scalar_select %p51, 0, %s50
      %s53 = sadd.s32 1, %s44
      %s54 = scalar_select %p51, %s53, %s44
      %p55 = scmp.ge.s32.totalorder %s54, 2
      %s56 = scalar_select %p55, 0, %s54
      %s57 = ssub.s32 %s44, %s56
      %s58 = ssub.s32 %s45, %s52
      %s59 = sor.u32 %s57, %s58
      %p60 = scmp.eq.s32.totalorder %s59, 0
      %s62 = sadd.s32 %s61, 1
      %s63 = scalar_select %p60, %s61, %s62
      %p66 = pneg %p60
      %p67 = scmp.eq.s32.totalorder %s37, 1
      %p68 = por %p66, %p67
      %p69 = scmp.ne.s32.totalorder %s61, %s64
      %p70 = scmp.eq.s32.totalorder %s37, 0
      %p71 = por %p69, %p70
      %p72 = scmp.ne.s32.totalorder %s61, %s64
      %p73 = scmp.eq.s32.totalorder %s42, 1
      %p74 = por %p72, %p73
      %p75 = scmp.ne.s32.totalorder %s64, %s65
      %p76 = scmp.eq.s32.totalorder %s42, 0
      %p77 = por %p75, %p76
      %p78 = scmp.ne.s32.totalorder %s64, %s65
      %p79 = scmp.eq.s32.totalorder %s43, 1
      %p80 = por %p78, %p79
      %p82 = scmp.ne.s32.totalorder %s65, %s81
      %p83 = scmp.eq.s32.totalorder %s43, 0
      %p84 = por %p82, %p83
      %s85 = ssub.s32 %s44, %s56
      %p86 = scmp.eq.s32.totalorder %s85, 0
      %s88 = sadd.s32 %s87, 1
      %s89 = scalar_select %p86, %s87, %s88
      %p92 = pneg %p86
      %p93 = scmp.eq.s32.totalorder %s37, 1
      %p94 = por %p92, %p93
      %p95 = scmp.ne.s32.totalorder %s87, %s90
      %p96 = scmp.eq.s32.totalorder %s37, 0
      %p97 = por %p95, %p96
      %p98 = scmp.ne.s32.totalorder %s87, %s90
      %p99 = scmp.eq.s32.totalorder %s42, 1
      %p100 = por %p98, %p99
      %p101 = scmp.ne.s32.totalorder %s90, %s91
      %p102 = scmp.eq.s32.totalorder %s42, 0
      %p103 = por %p101, %p102
      %p104 = scmp.ne.s32.totalorder %s90, %s91
      %p105 = scmp.eq.s32.totalorder %s43, 1
      %p106 = por %p104, %p105
      %p108 = scmp.ne.s32.totalorder %s91, %s107
      %p109 = scmp.eq.s32.totalorder %s43, 0
      %p110 = por %p108, %p109
      %s111 = ssub.s32 %s44, %s56
      %p112 = scmp.eq.s32.totalorder %s111, 0
      %s114 = sadd.s32 %s113, 1
      %s115 = scalar_select %p112, %s113, %s114
      %p118 = pneg %p112
      %p119 = scmp.eq.s32.totalorder %s37, 1
      %p120 = por %p118, %p119
      %p121 = scmp.ne.s32.totalorder %s113, %s116
      %p122 = scmp.eq.s32.totalorder %s37, 0
      %p123 = por %p121, %p122
      %p124 = scmp.ne.s32.totalorder %s113, %s116
      %p125 = scmp.eq.s32.totalorder %s42, 1
      %p126 = por %p124, %p125
      %p127 = scmp.ne.s32.totalorder %s116, %s117
      %p128 = scmp.eq.s32.totalorder %s42, 0
      %p129 = por %p127, %p128
      %p130 = scmp.ne.s32.totalorder %s116, %s117
      %p131 = scmp.eq.s32.totalorder %s43, 1
      %p132 = por %p130, %p131
      %p134 = scmp.ne.s32.totalorder %s117, %s133
      %p135 = scmp.eq.s32.totalorder %s43, 0
      %p136 = por %p134, %p135
      %s137 = ssub.s32 %s44, %s56
      %s138 = ssub.s32 %s45, %s52
      %s139 = sor.u32 %s137, %s138
      %p140 = scmp.eq.s32.totalorder %s139, 0
      %s142 = sadd.s32 %s141, 1
      %s143 = scalar_select %p140, %s141, %s142
      %p146 = pneg %p140
      %p147 = scmp.eq.s32.totalorder %s37, 1
      %p148 = por %p146, %p147
      %p149 = scmp.ne.s32.totalorder %s141, %s144
      %p150 = scmp.eq.s32.totalorder %s37, 0
      %p151 = por %p149, %p150
      %p152 = scmp.ne.s32.totalorder %s141, %s144
      %p153 = scmp.eq.s32.totalorder %s42, 1
      %p154 = por %p152, %p153
      %p155 = scmp.ne.s32.totalorder %s144, %s145
      %p156 = scmp.eq.s32.totalorder %s42, 0
      %p157 = por %p155, %p156
      %p158 = scmp.ne.s32.totalorder %s144, %s145
      %p159 = scmp.eq.s32.totalorder %s43, 1
      %p160 = por %p158, %p159
      %p162 = scmp.ne.s32.totalorder %s145, %s161
      %p163 = scmp.eq.s32.totalorder %s43, 0
      %p164 = por %p162, %p163
      %s166 = sadd.s32 %s165, 1
      %p169 = scmp.eq.s32.totalorder %s37, 1
      %p170 = scmp.ne.s32.totalorder %s165, %s167
      %p171 = scmp.eq.s32.totalorder %s37, 0
      %p172 = por %p170, %p171
      %p173 = scmp.ne.s32.totalorder %s165, %s167
      %p174 = scmp.eq.s32.totalorder %s42, 1
      %p175 = por %p173, %p174
      %p176 = scmp.ne.s32.totalorder %s167, %s168
      %p177 = scmp.eq.s32.totalorder %s42, 0
      %p178 = por %p176, %p177
      %p179 = scmp.ne.s32.totalorder %s167, %s168
      %p180 = scmp.eq.s32.totalorder %s43, 1
      %p181 = por %p179, %p180
      %p183 = scmp.ne.s32.totalorder %s168, %s182
      %p184 = scmp.eq.s32.totalorder %s43, 0
      %p185 = por %p183, %p184
      %s187 = sadd.s32 %s186, 1
      %p190 = scmp.eq.s32.totalorder %s37, 1
      %p191 = scmp.ne.s32.totalorder %s186, %s188
      %p192 = scmp.eq.s32.totalorder %s37, 0
      %p193 = por %p191, %p192
      %p194 = scmp.ne.s32.totalorder %s186, %s188
      %p195 = scmp.eq.s32.totalorder %s42, 1
      %p196 = por %p194, %p195
      %p197 = scmp.ne.s32.totalorder %s188, %s189
      %p198 = scmp.eq.s32.totalorder %s42, 0
      %p199 = por %p197, %p198
      %p200 = scmp.ne.s32.totalorder %s188, %s189
      %p201 = scmp.eq.s32.totalorder %s43, 1
      %p202 = por %p200, %p201
      %p204 = scmp.ne.s32.totalorder %s189, %s203
      %p205 = scmp.eq.s32.totalorder %s43, 0
      %p206 = por %p204, %p205
      %s208 = sadd.s32 %s207, 1
      %p211 = scmp.eq.s32.totalorder %s37, 1
      %p212 = scmp.ne.s32.totalorder %s207, %s209
      %p213 = scmp.eq.s32.totalorder %s37, 0
      %p214 = por %p212, %p213
      %p215 = scmp.ne.s32.totalorder %s207, %s209
      %p216 = scmp.eq.s32.totalorder %s42, 1
      %p217 = por %p215, %p216
      %p218 = scmp.ne.s32.totalorder %s209, %s210
      %p219 = scmp.eq.s32.totalorder %s42, 0
      %p220 = por %p218, %p219
      %p221 = scmp.ne.s32.totalorder %s209, %s210
      %p222 = scmp.eq.s32.totalorder %s43, 1
      %p223 = por %p221, %p222
      %p225 = scmp.ne.s32.totalorder %s210, %s224
      %p226 = scmp.eq.s32.totalorder %s43, 0
      %p227 = por %p225, %p226
      %s229 = sadd.s32 %s228, 1
      %p232 = scmp.eq.s32.totalorder %s37, 1
      %p233 = scmp.ne.s32.totalorder %s228, %s230
      %p234 = scmp.eq.s32.totalorder %s37, 0
      %p235 = por %p233, %p234
      %p236 = scmp.ne.s32.totalorder %s228, %s230
      %p237 = scmp.eq.s32.totalorder %s42, 1
      %p238 = por %p236, %p237
      %p239 = scmp.ne.s32.totalorder %s230, %s231
      %p240 = scmp.eq.s32.totalorder %s42, 0
      %p241 = por %p239, %p240
      %p242 = scmp.ne.s32.totalorder %s230, %s231
      %p243 = scmp.eq.s32.totalorder %s43, 1
      %p244 = por %p242, %p243
      %p246 = scmp.ne.s32.totalorder %s231, %s245
      %p247 = scmp.eq.s32.totalorder %s43, 0
      %p248 = por %p246, %p247
      %s250 = sadd.s32 %s249, 1
      %p253 = scmp.eq.s32.totalorder %s37, 1
      %p254 = scmp.ne.s32.totalorder %s249, %s251
      %p255 = scmp.eq.s32.totalorder %s37, 0
      %p256 = por %p254, %p255
      %p257 = scmp.ne.s32.totalorder %s249, %s251
      %p258 = scmp.eq.s32.totalorder %s42, 1
      %p259 = por %p257, %p258
      %p260 = scmp.ne.s32.totalorder %s251, %s252
      %p261 = scmp.eq.s32.totalorder %s42, 0
      %p262 = por %p260, %p261
      %p263 = scmp.ne.s32.totalorder %s251, %s252
      %p264 = scmp.eq.s32.totalorder %s43, 1
      %p265 = por %p263, %p264
      %p267 = scmp.ne.s32.totalorder %s252, %s266
      %p268 = scmp.eq.s32.totalorder %s43, 0
      %p269 = por %p267, %p268
      %s271 = sadd.s32 %s270, 1
      %p274 = scmp.eq.s32.totalorder %s37, 1
      %p275 = scmp.ne.s32.totalorder %s270, %s272
      %p276 = scmp.eq.s32.totalorder %s37, 0
      %p277 = por %p275, %p276
      %p278 = scmp.ne.s32.totalorder %s270, %s272
      %p279 = scmp.eq.s32.totalorder %s42, 1
      %p280 = por %p278, %p279
      %p281 = scmp.ne.s32.totalorder %s272, %s273
      %p282 = scmp.eq.s32.totalorder %s42, 0
      %p283 = por %p281, %p282
      %p284 = scmp.ne.s32.totalorder %s272, %s273
      %p285 = scmp.eq.s32.totalorder %s43, 1
      %p286 = por %p284, %p285
      %p288 = scmp.ne.s32.totalorder %s273, %s287
      %p289 = scmp.eq.s32.totalorder %s43, 0
      %p290 = por %p288, %p289
      %s292 = sadd.s32 %s291, 1
      %p295 = scmp.eq.s32.totalorder %s37, 1
      %p296 = scmp.ne.s32.totalorder %s291, %s293
      %p297 = scmp.eq.s32.totalorder %s37, 0
      %p298 = por %p296, %p297
      %p299 = scmp.ne.s32.totalorder %s291, %s293
      %p300 = scmp.eq.s32.totalorder %s42, 1
      %p301 = por %p299, %p300
      %p302 = scmp.ne.s32.totalorder %s293, %s294
      %p303 = scmp.eq.s32.totalorder %s42, 0
      %p304 = por %p302, %p303
      %p305 = scmp.ne.s32.totalorder %s293, %s294
      %p306 = scmp.eq.s32.totalorder %s43, 1
      %p307 = por %p305, %p306
      %p309 = scmp.ne.s32.totalorder %s294, %s308
      %p310 = scmp.eq.s32.totalorder %s43, 0
      %p311 = por %p309, %p310
      %s313 = sadd.s32 %s312, 1
      %p316 = scmp.eq.s32.totalorder %s37, 1
      %p317 = scmp.ne.s32.totalorder %s312, %s314
      %p318 = scmp.eq.s32.totalorder %s37, 0
      %p319 = por %p317, %p318
      %p320 = scmp.ne.s32.totalorder %s312, %s314
      %p321 = scmp.eq.s32.totalorder %s42, 1
      %p322 = por %p320, %p321
      %p323 = scmp.ne.s32.totalorder %s314, %s315
      %p324 = scmp.eq.s32.totalorder %s42, 0
      %p325 = por %p323, %p324
      %p326 = scmp.ne.s32.totalorder %s314, %s315
      %p327 = scmp.eq.s32.totalorder %s43, 1
      %p328 = por %p326, %p327
      %p330 = scmp.ne.s32.totalorder %s315, %s329
      %p331 = scmp.eq.s32.totalorder %s43, 0
      %p332 = por %p330, %p331
      %s334 = sadd.s32 %s333, 1
      %p337 = scmp.eq.s32.totalorder %s37, 1
      %p338 = scmp.ne.s32.totalorder %s333, %s335
      %p339 = scmp.eq.s32.totalorder %s37, 0
      %p340 = por %p338, %p339
      %p341 = scmp.ne.s32.totalorder %s333, %s335
      %p342 = scmp.eq.s32.totalorder %s42, 1
      %p343 = por %p341, %p342
      %p344 = scmp.ne.s32.totalorder %s335, %s336
      %p345 = scmp.eq.s32.totalorder %s42, 0
      %p346 = por %p344, %p345
      %p347 = scmp.ne.s32.totalorder %s335, %s336
      %p348 = scmp.eq.s32.totalorder %s43, 1
      %p349 = por %p347, %p348
      %p351 = scmp.ne.s32.totalorder %s336, %s350
      %p352 = scmp.eq.s32.totalorder %s43, 0
      %p353 = por %p351, %p352
      %s355 = sadd.s32 %s354, 1
      %p358 = scmp.eq.s32.totalorder %s37, 1
      %p359 = scmp.ne.s32.totalorder %s354, %s356
      %p360 = scmp.eq.s32.totalorder %s37, 0
      %p361 = por %p359, %p360
      %p362 = scmp.ne.s32.totalorder %s354, %s356
      %p363 = scmp.eq.s32.totalorder %s42, 1
      %p364 = por %p362, %p363
      %p365 = scmp.ne.s32.totalorder %s356, %s357
      %p366 = scmp.eq.s32.totalorder %s42, 0
      %p367 = por %p365, %p366
      %p368 = scmp.ne.s32.totalorder %s356, %s357
      %p369 = scmp.eq.s32.totalorder %s43, 1
      %p370 = por %p368, %p369
      %p372 = scmp.ne.s32.totalorder %s357, %s371
      %p373 = scmp.eq.s32.totalorder %s43, 0
      %p374 = por %p372, %p373
      %s375 = ssub.s32 %s44, %s56
      %s376 = ssub.s32 %s45, %s52
      %s377 = sor.u32 %s375, %s376
      %p378 = scmp.eq.s32.totalorder %s377, 0
      %s380 = sadd.s32 %s379, 1
      %s381 = scalar_select %p378, %s379, %s380
      %p384 = pneg %p378
      %p385 = scmp.eq.s32.totalorder %s37, 1
      %p386 = por %p384, %p385
      %p387 = scmp.ne.s32.totalorder %s379, %s382
      %p388 = scmp.eq.s32.totalorder %s37, 0
      %p389 = por %p387, %p388
      %p390 = scmp.ne.s32.totalorder %s379, %s382
      %p391 = scmp.eq.s32.totalorder %s42, 1
      %p392 = por %p390, %p391
      %p393 = scmp.ne.s32.totalorder %s382, %s383
      %p394 = scmp.eq.s32.totalorder %s42, 0
      %p395 = por %p393, %p394
      %p396 = scmp.ne.s32.totalorder %s382, %s383
      %p397 = scmp.eq.s32.totalorder %s43, 1
      %p398 = por %p396, %p397
      %p400 = scmp.ne.s32.totalorder %s383, %s399
      %p401 = scmp.eq.s32.totalorder %s43, 0
      %p402 = por %p400, %p401
      %s403 = ssub.s32 %s44, %s56
      %s404 = ssub.s32 %s45, %s52
      %s405 = sor.u32 %s403, %s404
      %p406 = scmp.eq.s32.totalorder %s405, 0
      %s408 = sadd.s32 %s407, 1
      %s409 = scalar_select %p406, %s407, %s408
      %p412 = pneg %p406
      %p413 = scmp.eq.s32.totalorder %s37, 1
      %p414 = por %p412, %p413
      %p415 = scmp.ne.s32.totalorder %s407, %s410
      %p416 = scmp.eq.s32.totalorder %s37, 0
      %p417 = por %p415, %p416
      %p418 = scmp.ne.s32.totalorder %s407, %s410
      %p419 = scmp.eq.s32.totalorder %s42, 1
      %p420 = por %p418, %p419
      %p421 = scmp.ne.s32.totalorder %s410, %s411
      %p422 = scmp.eq.s32.totalorder %s42, 0
      %p423 = por %p421, %p422
      %p424 = scmp.ne.s32.totalorder %s410, %s411
      %p425 = scmp.eq.s32.totalorder %s43, 1
      %p426 = por %p424, %p425
      %p428 = scmp.ne.s32.totalorder %s411, %s427
      %p429 = scmp.eq.s32.totalorder %s43, 0
      %p430 = por %p428, %p429
      %p431 = scmp.le.s32.totalorder 1, %s37
      %p432 = scmp.lt.s32.totalorder %s37, 3
      %p433 = pnand %p431, %p432
      %p434 = pneg %p433
      // Predicated region
      $region9: #{tpu_custom_call.1} parent=5 // pred_check
        _
      $region10: #{tpu_custom_call.1} parent=5 // pred_check_branch
        %436 = sbr.rel (%p433) target = $region12
      $region11: #{tpu_custom_call.1} parent=5 // pred_region
        %s437 = ssub.s32 %s37, 1
        // Predicated region
        $region13: #{tpu_custom_call.1} parent=11 // pred_check
          %p438 = pneg %p178
        $region14: #{tpu_custom_call.1} parent=11 // pred_check_branch
          %440 = sbr.rel (%p438) target = $region16
        $region15: #{tpu_custom_call.1} parent=11 // pred_region
          _
        $region16: #{tpu_custom_call.1} parent=11 // pred_fallthru
          _
        // Predicated region
        $region17: #{tpu_custom_call.1} parent=11 // pred_check
          %p441 = pneg %p199
        $region18: #{tpu_custom_call.1} parent=11 // pred_check_branch
          %443 = sbr.rel (%p441) target = $region20
        $region19: #{tpu_custom_call.1} parent=11 // pred_region
          _
        $region20: #{tpu_custom_call.1} parent=11 // pred_fallthru
          _
        // Predicated region
        $region21: #{tpu_custom_call.1} parent=11 // pred_check
          %p444 = pneg %p220
        $region22: #{tpu_custom_call.1} parent=11 // pred_check_branch
          %446 = sbr.rel (%p444) target = $region24
        $region23: #{tpu_custom_call.1} parent=11 // pred_region
          _
        $region24: #{tpu_custom_call.1} parent=11 // pred_fallthru
          _
        // Predicated region
        $region25: #{tpu_custom_call.1} parent=11 // pred_check
          %p447 = pneg %p241
        $region26: #{tpu_custom_call.1} parent=11 // pred_check_branch
          %449 = sbr.rel (%p447) target = $region28
        $region27: #{tpu_custom_call.1} parent=11 // pred_region
          _
        $region28: #{tpu_custom_call.1} parent=11 // pred_fallthru
          _
        // Predicated region
        $region29: #{tpu_custom_call.1} parent=11 // pred_check
          %p450 = pneg %p262
        $region30: #{tpu_custom_call.1} parent=11 // pred_check_branch
          %452 = sbr.rel (%p450) target = $region32
        $region31: #{tpu_custom_call.1} parent=11 // pred_region
          _
        $region32: #{tpu_custom_call.1} parent=11 // pred_fallthru
          _
        // Predicated region
        $region33: #{tpu_custom_call.1} parent=11 // pred_check
          %p453 = pneg %p283
        $region34: #{tpu_custom_call.1} parent=11 // pred_check_branch
          %455 = sbr.rel (%p453) target = $region36
        $region35: #{tpu_custom_call.1} parent=11 // pred_region
          _
        $region36: #{tpu_custom_call.1} parent=11 // pred_fallthru
          _
        // Predicated region
        $region37: #{tpu_custom_call.1} parent=11 // pred_check
          %p456 = pneg %p304
        $region38: #{tpu_custom_call.1} parent=11 // pred_check_branch
          %458 = sbr.rel (%p456) target = $region40
        $region39: #{tpu_custom_call.1} parent=11 // pred_region
          %460 = vsyncadd [#allocation11], 0
          %s461 = sshll.u32 %s10, 4
          %s462 = int_to_ptr.hbm [resolvable:$true] %s461
          %s463 = sshll.u32 [#allocation12], 4
          %s464 = int_to_ptr.vmem [resolvable:$true] %s463
          %469 = dma.hbm_to_vmem [thread:$0]  %s462, 512, %s464, [#allocation11], 128, 128, 8
        $region40: #{tpu_custom_call.1} parent=11 // pred_fallthru
          _
        // Predicated region
        $region41: #{tpu_custom_call.1} parent=11 // pred_check
          %p470 = pneg %p325
        $region42: #{tpu_custom_call.1} parent=11 // pred_check_branch
          %472 = sbr.rel (%p470) target = $region44
        $region43: #{tpu_custom_call.1} parent=11 // pred_region
          _
        $region44: #{tpu_custom_call.1} parent=11 // pred_fallthru
          _
        // Predicated region
        $region45: #{tpu_custom_call.1} parent=11 // pred_check
          %p473 = pneg %p346
        $region46: #{tpu_custom_call.1} parent=11 // pred_check_branch
          %475 = sbr.rel (%p473) target = $region48
        $region47: #{tpu_custom_call.1} parent=11 // pred_region
          _
        $region48: #{tpu_custom_call.1} parent=11 // pred_fallthru
          _
        // Predicated region
        $region49: #{tpu_custom_call.1} parent=11 // pred_check
          %p476 = pneg %p367
        $region50: #{tpu_custom_call.1} parent=11 // pred_check_branch
          %478 = sbr.rel (%p476) target = $region52
        $region51: #{tpu_custom_call.1} parent=11 // pred_region
          _
        $region52: #{tpu_custom_call.1} parent=11 // pred_fallthru
          _
      $region12: #{tpu_custom_call.1} parent=5 // pred_fallthru
        _
      %p479 = scmp.lt.s32.totalorder %s37, 2
      // Predicated region
      $region53: #{tpu_custom_call.1} parent=5 // pred_check
        %p480 = pneg %p479
      $region54: #{tpu_custom_call.1} parent=5 // pred_check_branch
        %482 = sbr.rel (%p480) target = $region56
      $region55: #{tpu_custom_call.1} parent=5 // pred_region
        // Predicated region
        $region57: #{tpu_custom_call.1} parent=55 // pred_check
          %p483 = pneg %p71
        $region58: #{tpu_custom_call.1} parent=55 // pred_check_branch
          %485 = sbr.rel (%p483) target = $region60
        $region59: #{tpu_custom_call.1} parent=55 // pred_region
          %s486 = sand.u32 %s61, 1
          %s487 = scalar_lea.sflag [#allocation5], %s486
          %s488 = sand.u32 %s61, 1
          %s489 = smul.addr %s488, 8
          %s490 = scalar_lea.vmem [#allocation4], %s489
          %492 = vsyncadd %s487, 0
          %s493 = sadd.s32 %s45, %s44
          %s494 = smul.addr %s493, 8
          %s495 = scalar_lea.hbm %s0, %s494
          %s497 = sshll.u32 %s495, 4
          %s498 = int_to_ptr.hbm [resolvable:$true] %s497
          %s499 = sshll.u32 %s490, 4
          %s500 = int_to_ptr.vmem [resolvable:$true] %s499
          %502 = dma.hbm_to_vmem [thread:$0]  %s498, 128, %s500, %s487
        $region60: #{tpu_custom_call.1} parent=55 // pred_fallthru
          _
        // Predicated region
        $region61: #{tpu_custom_call.1} parent=55 // pred_check
          %p503 = pneg %p97
        $region62: #{tpu_custom_call.1} parent=55 // pred_check_branch
          %505 = sbr.rel (%p503) target = $region64
        $region63: #{tpu_custom_call.1} parent=55 // pred_region
          %s506 = sand.u32 %s37, 1
          %s507 = scalar_lea.sflag [#allocation8], %s506
          %s508 = sand.u32 %s87, 1
          %s509 = smul.addr %s508, 8
          %s510 = scalar_lea.vmem [#allocation7], %s509
          %512 = vsyncadd %s507, 0
          %s513 = smul.addr %s44, 8
          %s514 = scalar_lea.hbm %s1, %s513
          %s516 = sshll.u32 %s514, 4
          %s517 = int_to_ptr.hbm [resolvable:$true] %s516
          %s518 = sshll.u32 %s510, 4
          %s519 = int_to_ptr.vmem [resolvable:$true] %s518
          %521 = dma.hbm_to_vmem [thread:$0]  %s517, 128, %s519, %s507
        $region64: #{tpu_custom_call.1} parent=55 // pred_fallthru
          _
        // Predicated region
        $region65: #{tpu_custom_call.1} parent=55 // pred_check
          %p522 = pneg %p123
        $region66: #{tpu_custom_call.1} parent=55 // pred_check_branch
          %524 = sbr.rel (%p522) target = $region68
        $region67: #{tpu_custom_call.1} parent=55 // pred_region
          %s525 = sand.u32 %s37, 1
          %s526 = scalar_lea.sflag [#allocation8], %s525
          %s527 = sand.u32 %s113, 1
          %s528 = smul.addr %s527, 8
          %s529 = scalar_lea.vmem [#allocation9], %s528
          %531 = vsyncadd %s526, 0
          %s532 = smul.addr %s44, 8
          %s533 = scalar_lea.hbm %s2, %s532
          %s535 = sshll.u32 %s533, 4
          %s536 = int_to_ptr.hbm [resolvable:$true] %s535
          %s537 = sshll.u32 %s529, 4
          %s538 = int_to_ptr.vmem [resolvable:$true] %s537
          %540 = dma.hbm_to_vmem [thread:$0]  %s536, 128, %s538, %s526
        $region68: #{tpu_custom_call.1} parent=55 // pred_fallthru
          _
        // Predicated region
        $region69: #{tpu_custom_call.1} parent=55 // pred_check
          %p541 = pneg %p151
        $region70: #{tpu_custom_call.1} parent=55 // pred_check_branch
          %543 = sbr.rel (%p541) target = $region72
        $region71: #{tpu_custom_call.1} parent=55 // pred_region
          %s544 = sand.u32 %s37, 1
          %s545 = scalar_lea.sflag [#allocation11], %s544
          %s546 = sand.u32 %s141, 1
          %s547 = smul.addr %s546, 2
          %s548 = scalar_lea.vmem [#allocation10], %s547
          %550 = vsyncadd %s545, 0
          %s551 = sadd.s32 %s45, %s44
          %s552 = smul.addr %s551, 2
          %s553 = scalar_lea.hbm %s3, %s552
          %s555 = sshll.u32 %s553, 4
          %s556 = int_to_ptr.hbm [resolvable:$true] %s555
          %s557 = sshll.u32 %s548, 4
          %s558 = int_to_ptr.vmem [resolvable:$true] %s557
          %560 = dma.hbm_to_vmem [thread:$0]  %s556, 32, %s558, %s545
        $region72: #{tpu_custom_call.1} parent=55 // pred_fallthru
          _
      $region56: #{tpu_custom_call.1} parent=5 // pred_fallthru
        _
      %p561 = scmp.le.s32.totalorder 1, %s37
      %p562 = scmp.lt.s32.totalorder %s37, 3
      %p563 = pnand %p561, %p562
      %p564 = pneg %p563
      // Predicated region
      $region73: #{tpu_custom_call.1} parent=5 // pred_check
        _
      $region74: #{tpu_custom_call.1} parent=5 // pred_check_branch
        %566 = sbr.rel (%p563) target = $region76
      $region75: #{tpu_custom_call.1} parent=5 // pred_region
        %s567 = ssub.s32 %s37, 1
        %s568 = sand.u32 %s64, 1
        %s569 = scalar_lea.sflag [#allocation5], %s568
        %s570 = sand.u32 %s64, 1
        %s571 = smul.addr %s570, 8
        %s572 = scalar_lea.vmem [#allocation4], %s571
        // Predicated region
        $region77: #{tpu_custom_call.1} parent=75 // pred_check
          %p573 = pneg %p77
        $region78: #{tpu_custom_call.1} parent=75 // pred_check_branch
          %575 = sbr.rel (%p573) target = $region80
        $region79: #{tpu_custom_call.1} parent=75 // pred_region
          %577 = dma.done %s569, 128
        $region80: #{tpu_custom_call.1} parent=75 // pred_fallthru
          _
        %s578 = sand.u32 %s42, 1
        %s579 = scalar_lea.sflag [#allocation8], %s578
        %s580 = sand.u32 %s90, 1
        %s581 = smul.addr %s580, 8
        %s582 = scalar_lea.vmem [#allocation7], %s581
        // Predicated region
        $region81: #{tpu_custom_call.1} parent=75 // pred_check
          %p583 = pneg %p103
        $region82: #{tpu_custom_call.1} parent=75 // pred_check_branch
          %585 = sbr.rel (%p583) target = $region84
        $region83: #{tpu_custom_call.1} parent=75 // pred_region
          %587 = dma.done %s579, 128
        $region84: #{tpu_custom_call.1} parent=75 // pred_fallthru
          _
        %s588 = sand.u32 %s42, 1
        %s589 = scalar_lea.sflag [#allocation8], %s588
        %s590 = sand.u32 %s116, 1
        %s591 = smul.addr %s590, 8
        %s592 = scalar_lea.vmem [#allocation9], %s591
        // Predicated region
        $region85: #{tpu_custom_call.1} parent=75 // pred_check
          %p593 = pneg %p129
        $region86: #{tpu_custom_call.1} parent=75 // pred_check_branch
          %595 = sbr.rel (%p593) target = $region88
        $region87: #{tpu_custom_call.1} parent=75 // pred_region
          %597 = dma.done %s589, 128
        $region88: #{tpu_custom_call.1} parent=75 // pred_fallthru
          _
        %s598 = sand.u32 %s42, 1
        %s599 = scalar_lea.sflag [#allocation11], %s598
        %s600 = sand.u32 %s144, 1
        %s601 = smul.addr %s600, 2
        %s602 = scalar_lea.vmem [#allocation10], %s601
        // Predicated region
        $region89: #{tpu_custom_call.1} parent=75 // pred_check
          %p603 = pneg %p157
        $region90: #{tpu_custom_call.1} parent=75 // pred_check_branch
          %605 = sbr.rel (%p603) target = $region92
        $region91: #{tpu_custom_call.1} parent=75 // pred_region
          %607 = dma.done %s599, 32
        $region92: #{tpu_custom_call.1} parent=75 // pred_fallthru
          _
        // Predicated region
        $region93: #{tpu_custom_call.1} parent=75 // pred_check
          %p608 = pneg %p304
        $region94: #{tpu_custom_call.1} parent=75 // pred_check_branch
          %610 = sbr.rel (%p608) target = $region96
        $region95: #{tpu_custom_call.1} parent=75 // pred_region
          %612 = dma.done [#allocation11], 512
        $region96: #{tpu_custom_call.1} parent=75 // pred_fallthru
          _
        %s613 = sand.u32 %s64, 1
        %s614 = scalar_lea.sflag [#allocation5], %s613
        %s615 = sand.u32 %s64, 1
        %s616 = smul.addr %s615, 8
        %s617 = scalar_lea.vmem [#allocation4], %s616
        %p618 = pneg %p77
        %p619 = pneg %p74
        %s620 = sand.u32 %s42, 1
        %s621 = scalar_lea.sflag [#allocation8], %s620
        %s622 = sand.u32 %s90, 1
        %s623 = smul.addr %s622, 8
        %s624 = scalar_lea.vmem [#allocation7], %s623
        %p625 = pneg %p103
        %p626 = pneg %p100
        %s627 = sand.u32 %s42, 1
        %s628 = scalar_lea.sflag [#allocation8], %s627
        %s629 = sand.u32 %s116, 1
        %s630 = smul.addr %s629, 8
        %s631 = scalar_lea.vmem [#allocation9], %s630
        %p632 = pneg %p129
        %p633 = pneg %p126
        %s634 = sand.u32 %s42, 1
        %s635 = scalar_lea.sflag [#allocation11], %s634
        %s636 = sand.u32 %s144, 1
        %s637 = smul.addr %s636, 2
        %s638 = scalar_lea.vmem [#allocation10], %s637
        %p639 = pneg %p157
        %p640 = pneg %p154
        %p641 = pneg %p178
        %p642 = pneg %p175
        %p643 = pneg %p199
        %p644 = pneg %p196
        %p645 = pneg %p220
        %p646 = pneg %p217
        %p647 = pneg %p241
        %p648 = pneg %p238
        %p649 = pneg %p262
        %p650 = pneg %p259
        %p651 = pneg %p283
        %p652 = pneg %p280
        %p653 = pneg %p304
        %p654 = pneg %p301
        %p655 = pneg %p325
        %p656 = pneg %p322
        %p657 = pneg %p346
        %p658 = pneg %p343
        %p659 = pneg %p367
        %p660 = pneg %p364
        %p661 = pneg %p395
        %p662 = pneg %p392
        %s663 = sand.u32 %s382, 1
        %s664 = scalar_lea.sflag [#allocation6], %s663
        %s665 = sand.u32 %s382, 1
        %s666 = smul.addr %s665, 8
        %s667 = scalar_lea.vmem [#allocation13], %s666
        %p668 = pneg %p423
        %p669 = pneg %p420
        %s670 = sand.u32 %s410, 1
        %s671 = scalar_lea.sflag [#allocation15], %s670
        %s672 = sand.u32 %s410, 1
        %s673 = smul.addr %s672, 32
        %s674 = scalar_lea.vmem [#allocation14], %s673
        %p675 = scmp.eq.s32.totalorder %s47, 0
        // Predicated region
        $region97: #{tpu_custom_call.1} parent=75 // pred_check
          %p676 = pneg %p675
        $region98: #{tpu_custom_call.1} parent=75 // pred_check_branch
          %678 = sbr.rel (%p676) target = $region100
        $region99: #{tpu_custom_call.1} parent=75 // pred_region
          %v679 = vld [vmem:[%s582] sm:$0xff]
          %v680 = vld [vmem:[%s592] sm:$0xff]
          %v681 = vld [vmem:[%s6] sm:$0xff]
          %v682 = vld [vmem:[%s6 + $0x8] sm:$0xff]
          %v683 = vld [vmem:[%s6 + $0x10] sm:$0xff]
          %v684 = vld [vmem:[%s6 + $0x18] sm:$0xff]
          %v685 = vld [vmem:[%s7] sm:$0xff]
          %v686 = vld [vmem:[%s7 + $0x8] sm:$0xff]
          %v687 = vld [vmem:[%s7 + $0x10] sm:$0xff]
          %v688 = vld [vmem:[%s7 + $0x18] sm:$0xff]
          %690 = vset.pattern.permute.xlu0 0
          %691 = vperm.xlu0 %690, %v685
          %v692 = vpop.permute.xlu0 %691
          %695 = vset.pattern.permute.xlu0 0
          %696 = vperm.xlu0 %695, %v686
          %v697 = vpop.permute.xlu0 %696
          %700 = vset.pattern.permute.xlu0 0
          %701 = vperm.xlu0 %700, %v687
          %v702 = vpop.permute.xlu0 %701
          %705 = vset.pattern.permute.xlu0 0
          %706 = vperm.xlu0 %705, %v688
          %v707 = vpop.permute.xlu0 %706
          %vm709 = vcmask 261120
          %v711 = vsel %vm709, %v681, 0
          %v714 = vsel %vm709, %v682, 0
          %v717 = vsel %vm709, %v683, 0
          %v720 = vsel %vm709, %v684, 0
          %v723 = vsel %vm709, %v679, 0
          %725 = vmatpush.xpose.msra.mxu0 0.0
          %726 = vmatpush.xpose.msra.mxu0 0.0
          %727 = vmatpush.xpose.msra.mxu0 0.0
          %728 = vmatpush.xpose.msra.mxu0 0.0
          %729 = vmatpush.xpose.msra.mxu0 0.0
          %730 = vmatpush.xpose.msra.mxu0 0.0
          %731 = vmatpush.xpose.msra.mxu0 0.0
          %732 = vmatpush.xpose.msra.mxu0 0.0
          %733 = vmatpush.xpose.msra.mxu0 0.0
          %734 = vmatpush.xpose.msra.mxu0 0.0
          %735 = vmatpush.xpose.msra.mxu0 0.0
          %736 = vmatpush.xpose.msra.mxu0 0.0
          %737 = vmatpush.xpose.msra.mxu0 0.0
          %738 = vmatpush.xpose.msra.mxu0 0.0
          %739 = vmatpush.xpose.msra.mxu0 0.0
          %740 = vmatpush.xpose.msra.mxu0 %v723
          %741 = vmatmul.f32.gmra.mxu0 %v711
          %v742 = vpop.f32.mrf.mxu0
          %v743 = vadd.f32 %v692, %v742
          %744 = vmatmul.f32.gmra.mxu0 %v714
          %v745 = vpop.f32.mrf.mxu0
          %v746 = vadd.f32 %v697, %v745
          %747 = vmatmul.f32.gmra.mxu0 %v717
          %v748 = vpop.f32.mrf.mxu0
          %v749 = vadd.f32 %v702, %v748
          %750 = vmatmul.f32.gmra.mxu0 %v720
          %v751 = vpop.f32.mrf.mxu0
          %v752 = vadd.f32 %v707, %v751
          %753 = vdwg.mxu0
          %v754 = vld [vmem:[%s8] sm:$0xff]
          %v755 = vld [vmem:[%s8 + $0x8] sm:$0xff]
          %v756 = vld [vmem:[%s8 + $0x10] sm:$0xff]
          %v757 = vld [vmem:[%s8 + $0x18] sm:$0xff]
          %v758 = vld [vmem:[%s9] sm:$0xff]
          %v759 = vld [vmem:[%s9 + $0x8] sm:$0xff]
          %v760 = vld [vmem:[%s9 + $0x10] sm:$0xff]
          %v761 = vld [vmem:[%s9 + $0x18] sm:$0xff]
          %763 = vset.pattern.permute.xlu0 0
          %764 = vperm.xlu0 %763, %v758
          %v765 = vpop.permute.xlu0 %764
          %768 = vset.pattern.permute.xlu0 0
          %769 = vperm.xlu0 %768, %v759
          %v770 = vpop.permute.xlu0 %769
          %773 = vset.pattern.permute.xlu0 0
          %774 = vperm.xlu0 %773, %v760
          %v775 = vpop.permute.xlu0 %774
          %778 = vset.pattern.permute.xlu0 0
          %779 = vperm.xlu0 %778, %v761
          %v780 = vpop.permute.xlu0 %779
          %v783 = vsel %vm709, %v754, 0
          %v786 = vsel %vm709, %v755, 0
          %v789 = vsel %vm709, %v756, 0
          %v792 = vsel %vm709, %v757, 0
          %v795 = vsel %vm709, %v680, 0
          %797 = vmatpush.xpose.msra.mxu0 0.0
          %798 = vmatpush.xpose.msra.mxu0 0.0
          %799 = vmatpush.xpose.msra.mxu0 0.0
          %800 = vmatpush.xpose.msra.mxu0 0.0
          %801 = vmatpush.xpose.msra.mxu0 0.0
          %802 = vmatpush.xpose.msra.mxu0 0.0
          %803 = vmatpush.xpose.msra.mxu0 0.0
          %804 = vmatpush.xpose.msra.mxu0 0.0
          %805 = vmatpush.xpose.msra.mxu0 0.0
          %806 = vmatpush.xpose.msra.mxu0 0.0
          %807 = vmatpush.xpose.msra.mxu0 0.0
          %808 = vmatpush.xpose.msra.mxu0 0.0
          %809 = vmatpush.xpose.msra.mxu0 0.0
          %810 = vmatpush.xpose.msra.mxu0 0.0
          %811 = vmatpush.xpose.msra.mxu0 0.0
          %812 = vmatpush.xpose.msra.mxu0 %v795
          %813 = vmatmul.f32.gmra.mxu0 %v783
          %v814 = vpop.f32.mrf.mxu0
          %v815 = vadd.f32 %v765, %v814
          %816 = vmatmul.f32.gmra.mxu0 %v786
          %v817 = vpop.f32.mrf.mxu0
          %v818 = vadd.f32 %v770, %v817
          %819 = vmatmul.f32.gmra.mxu0 %v789
          %v820 = vpop.f32.mrf.mxu0
          %v821 = vadd.f32 %v775, %v820
          %822 = vmatmul.f32.gmra.mxu0 %v792
          %v823 = vpop.f32.mrf.mxu0
          %v824 = vadd.f32 %v780, %v823
          %825 = vdwg.mxu0
          %vm826 = vcmask 64512
          %827 = vst.msk [vmem:[#allocation2] sm:$0xff] %vm826, %v743
          %828 = vst.msk [vmem:[#allocation2 + $0x8] sm:$0xff] %vm826, %v746
          %829 = vst.msk [vmem:[#allocation2 + $0x10] sm:$0xff] %vm826, %v749
          %830 = vst.msk [vmem:[#allocation2 + $0x18] sm:$0xff] %vm826, %v752
          %831 = vst.msk [vmem:[#allocation3] sm:$0xff] %vm826, %v815
          %832 = vst.msk [vmem:[#allocation3 + $0x8] sm:$0xff] %vm826, %v818
          %833 = vst.msk [vmem:[#allocation3 + $0x10] sm:$0xff] %vm826, %v821
          %834 = vst.msk [vmem:[#allocation3 + $0x18] sm:$0xff] %vm826, %v824
        $region100: #{tpu_custom_call.1} parent=75 // pred_fallthru
          _
        %v835 = vld [vmem:[%s572] sm:$0xff]
        %v836 = vld [vmem:[%s4] sm:$0xff]
        %v837 = vld [vmem:[%s4 + $0x8] sm:$0xff]
        %v838 = vld [vmem:[%s4 + $0x10] sm:$0xff]
        %v839 = vld [vmem:[%s4 + $0x18] sm:$0xff]
        %v840 = vld [vmem:[%s5] sm:$0xff]
        %v841 = vld [vmem:[%s5 + $0x8] sm:$0xff]
        %v842 = vld [vmem:[%s5 + $0x10] sm:$0xff]
        %v843 = vld [vmem:[%s5 + $0x18] sm:$0xff]
        %845 = vset.pattern.permute.xlu0 0
        %846 = vperm.xlu0 %845, %v840
        %v847 = vpop.permute.xlu0 %846
        %850 = vset.pattern.permute.xlu0 0
        %851 = vperm.xlu0 %850, %v841
        %v852 = vpop.permute.xlu0 %851
        %855 = vset.pattern.permute.xlu0 0
        %856 = vperm.xlu0 %855, %v842
        %v857 = vpop.permute.xlu0 %856
        %860 = vset.pattern.permute.xlu0 0
        %861 = vperm.xlu0 %860, %v843
        %v862 = vpop.permute.xlu0 %861
        %vm864 = vcmask 261120
        %v866 = vsel %vm864, %v836, 0
        %v869 = vsel %vm864, %v837, 0
        %v872 = vsel %vm864, %v838, 0
        %v875 = vsel %vm864, %v839, 0
        %v878 = vsel %vm864, %v835, 0
        %880 = vmatpush.xpose.msra.mxu0 0.0
        %881 = vmatpush.xpose.msra.mxu0 0.0
        %882 = vmatpush.xpose.msra.mxu0 0.0
        %883 = vmatpush.xpose.msra.mxu0 0.0
        %884 = vmatpush.xpose.msra.mxu0 0.0
        %885 = vmatpush.xpose.msra.mxu0 0.0
        %886 = vmatpush.xpose.msra.mxu0 0.0
        %887 = vmatpush.xpose.msra.mxu0 0.0
        %888 = vmatpush.xpose.msra.mxu0 0.0
        %889 = vmatpush.xpose.msra.mxu0 0.0
        %890 = vmatpush.xpose.msra.mxu0 0.0
        %891 = vmatpush.xpose.msra.mxu0 0.0
        %892 = vmatpush.xpose.msra.mxu0 0.0
        %893 = vmatpush.xpose.msra.mxu0 0.0
        %894 = vmatpush.xpose.msra.mxu0 0.0
        %895 = vmatpush.xpose.msra.mxu0 %v878
        %896 = vmatmul.f32.gmra.mxu0 %v866
        %v897 = vpop.f32.mrf.mxu0
        %v898 = vadd.f32 %v847, %v897
        %899 = vmatmul.f32.gmra.mxu0 %v869
        %v900 = vpop.f32.mrf.mxu0
        %v901 = vadd.f32 %v852, %v900
        %902 = vmatmul.f32.gmra.mxu0 %v872
        %v903 = vpop.f32.mrf.mxu0
        %v904 = vadd.f32 %v857, %v903
        %905 = vmatmul.f32.gmra.mxu0 %v875
        %v906 = vpop.f32.mrf.mxu0
        %v907 = vadd.f32 %v862, %v906
        %908 = vdwg.mxu0
        %v909 = vmul.f32 %v898, 0.35355338
        %v910 = vmul.f32 %v901, 0.35355338
        %v911 = vmul.f32 %v904, 0.35355338
        %v912 = vmul.f32 %v907, 0.35355338
        %v913 = vld [vmem:[#allocation2] sm:$0xff]
        %v914 = vld [vmem:[#allocation2 + $0x8] sm:$0xff]
        %v915 = vld [vmem:[#allocation2 + $0x10] sm:$0xff]
        %v916 = vld [vmem:[#allocation2 + $0x18] sm:$0xff]
        %v917 = vld [vmem:[#allocation3] sm:$0xff]
        %v918 = vld [vmem:[#allocation3 + $0x8] sm:$0xff]
        %v919 = vld [vmem:[#allocation3 + $0x10] sm:$0xff]
        %v920 = vld [vmem:[#allocation3 + $0x18] sm:$0xff]
        %v921 = vld [vmem:[%s602] sm:$0x3]
        %v922 = vunpack.c.0.s8 %v921
        %v923 = vcvt.s32.f32 %v922
        %v924 = vmul.f32 %v923, -1e+30
        %925 = vxpose.xlu0.b32.start [1/16] %v909, 128
        %926 = vxpose.xlu0.b32.cont [2/16] 0.0, 128
        %927 = vxpose.xlu0.b32.cont [3/16] 0.0, 128
        %928 = vxpose.xlu0.b32.cont [4/16] 0.0, 128
        %929 = vxpose.xlu0.b32.cont [5/16] 0.0, 128
        %930 = vxpose.xlu0.b32.cont [6/16] 0.0, 128
        %931 = vxpose.xlu0.b32.cont [7/16] 0.0, 128
        %932 = vxpose.xlu0.b32.cont [8/16] 0.0, 128
        %933 = vxpose.xlu0.b32.cont [9/16] 0.0, 128
        %934 = vxpose.xlu0.b32.cont [10/16] 0.0, 128
        %935 = vxpose.xlu0.b32.cont [11/16] 0.0, 128
        %936 = vxpose.xlu0.b32.cont [12/16] 0.0, 128
        %937 = vxpose.xlu0.b32.cont [13/16] 0.0, 128
        %938 = vxpose.xlu0.b32.cont [14/16] 0.0, 128
        %939 = vxpose.xlu0.b32.cont [15/16] 0.0, 128
        %940 = vxpose.xlu0.b32.end [16/16] 0.0, 128
        %v941 = vpop.trf.xlu0
        %v942 = vpop.trf.xlu0
        %v943 = vpop.trf.xlu0
        %v944 = vpop.trf.xlu0
        %v945 = vpop.trf.xlu0
        %v946 = vpop.trf.xlu0
        %v947 = vpop.trf.xlu0
        %v948 = vpop.trf.xlu0
        %v949 = vpop.trf.xlu0
        %v950 = vpop.trf.xlu0
        %v951 = vpop.trf.xlu0
        %v952 = vpop.trf.xlu0
        %v953 = vpop.trf.xlu0
        %v954 = vpop.trf.xlu0
        %v955 = vpop.trf.xlu0
        %v956 = vpop.trf.xlu0
        %vm957 = vcmask 64512
        %v959 = vsel %vm957, %v941, 0
        %961 = vmatpush.msra.mxu0 0.0
        %962 = vmatpush.msra.mxu0 0.0
        %963 = vmatpush.msra.mxu0 0.0
        %964 = vmatpush.msra.mxu0 0.0
        %965 = vmatpush.msra.mxu0 0.0
        %966 = vmatpush.msra.mxu0 0.0
        %967 = vmatpush.msra.mxu0 0.0
        %968 = vmatpush.msra.mxu0 0.0
        %969 = vmatpush.msra.mxu0 0.0
        %970 = vmatpush.msra.mxu0 0.0
        %971 = vmatpush.msra.mxu0 0.0
        %972 = vmatpush.msra.mxu0 0.0
        %973 = vmatpush.msra.mxu0 0.0
        %974 = vmatpush.msra.mxu0 0.0
        %975 = vmatpush.msra.mxu0 0.0
        %976 = vmatpush.msra.mxu0 %v913
        %977 = vmatmul.f32.gmra.mxu0 %v959
        %v978 = vpop.f32.mrf.mxu0
        %v979 = vadd.f32 %v924, %v978
        %980 = vdwg.mxu0
        %981 = vxpose.xlu0.b32.start [1/16] %v910, 128
        %982 = vxpose.xlu0.b32.cont [2/16] 0.0, 128
        %983 = vxpose.xlu0.b32.cont [3/16] 0.0, 128
        %984 = vxpose.xlu0.b32.cont [4/16] 0.0, 128
        %985 = vxpose.xlu0.b32.cont [5/16] 0.0, 128
        %986 = vxpose.xlu0.b32.cont [6/16] 0.0, 128
        %987 = vxpose.xlu0.b32.cont [7/16] 0.0, 128
        %988 = vxpose.xlu0.b32.cont [8/16] 0.0, 128
        %989 = vxpose.xlu0.b32.cont [9/16] 0.0, 128
        %990 = vxpose.xlu0.b32.cont [10/16] 0.0, 128
        %991 = vxpose.xlu0.b32.cont [11/16] 0.0, 128
        %992 = vxpose.xlu0.b32.cont [12/16] 0.0, 128
        %993 = vxpose.xlu0.b32.cont [13/16] 0.0, 128
        %994 = vxpose.xlu0.b32.cont [14/16] 0.0, 128
        %995 = vxpose.xlu0.b32.cont [15/16] 0.0, 128
        %996 = vxpose.xlu0.b32.end [16/16] 0.0, 128
        %v997 = vpop.trf.xlu0
        %v998 = vpop.trf.xlu0
        %v999 = vpop.trf.xlu0
        %v1000 = vpop.trf.xlu0
        %v1001 = vpop.trf.xlu0
        %v1002 = vpop.trf.xlu0
        %v1003 = vpop.trf.xlu0
        %v1004 = vpop.trf.xlu0
        %v1005 = vpop.trf.xlu0
        %v1006 = vpop.trf.xlu0
        %v1007 = vpop.trf.xlu0
        %v1008 = vpop.trf.xlu0
        %v1009 = vpop.trf.xlu0
        %v1010 = vpop.trf.xlu0
        %v1011 = vpop.trf.xlu0
        %v1012 = vpop.trf.xlu0
        %v1014 = vsel %vm957, %v997, 0
        %1016 = vmatpush.msra.mxu0 0.0
        %1017 = vmatpush.msra.mxu0 0.0
        %1018 = vmatpush.msra.mxu0 0.0
        %1019 = vmatpush.msra.mxu0 0.0
        %1020 = vmatpush.msra.mxu0 0.0
        %1021 = vmatpush.msra.mxu0 0.0
        %1022 = vmatpush.msra.mxu0 0.0
        %1023 = vmatpush.msra.mxu0 0.0
        %1024 = vmatpush.msra.mxu0 0.0
        %1025 = vmatpush.msra.mxu0 0.0
        %1026 = vmatpush.msra.mxu0 0.0
        %1027 = vmatpush.msra.mxu0 0.0
        %1028 = vmatpush.msra.mxu0 0.0
        %1029 = vmatpush.msra.mxu0 0.0
        %1030 = vmatpush.msra.mxu0 0.0
        %1031 = vmatpush.msra.mxu0 %v914
        %1032 = vmatmul.f32.gmra.mxu0 %v1014
        %v1033 = vpop.f32.mrf.mxu0
        %v1034 = vadd.f32 %v924, %v1033
        %1035 = vdwg.mxu0
        %1036 = vxpose.xlu0.b32.start [1/16] %v911, 128
        %1037 = vxpose.xlu0.b32.cont [2/16] 0.0, 128
        %1038 = vxpose.xlu0.b32.cont [3/16] 0.0, 128
        %1039 = vxpose.xlu0.b32.cont [4/16] 0.0, 128
        %1040 = vxpose.xlu0.b32.cont [5/16] 0.0, 128
        %1041 = vxpose.xlu0.b32.cont [6/16] 0.0, 128
        %1042 = vxpose.xlu0.b32.cont [7/16] 0.0, 128
        %1043 = vxpose.xlu0.b32.cont [8/16] 0.0, 128
        %1044 = vxpose.xlu0.b32.cont [9/16] 0.0, 128
        %1045 = vxpose.xlu0.b32.cont [10/16] 0.0, 128
        %1046 = vxpose.xlu0.b32.cont [11/16] 0.0, 128
        %1047 = vxpose.xlu0.b32.cont [12/16] 0.0, 128
        %1048 = vxpose.xlu0.b32.cont [13/16] 0.0, 128
        %1049 = vxpose.xlu0.b32.cont [14/16] 0.0, 128
        %1050 = vxpose.xlu0.b32.cont [15/16] 0.0, 128
        %1051 = vxpose.xlu0.b32.end [16/16] 0.0, 128
        %v1052 = vpop.trf.xlu0
        %v1053 = vpop.trf.xlu0
        %v1054 = vpop.trf.xlu0
        %v1055 = vpop.trf.xlu0
        %v1056 = vpop.trf.xlu0
        %v1057 = vpop.trf.xlu0
        %v1058 = vpop.trf.xlu0
        %v1059 = vpop.trf.xlu0
        %v1060 = vpop.trf.xlu0
        %v1061 = vpop.trf.xlu0
        %v1062 = vpop.trf.xlu0
        %v1063 = vpop.trf.xlu0
        %v1064 = vpop.trf.xlu0
        %v1065 = vpop.trf.xlu0
        %v1066 = vpop.trf.xlu0
        %v1067 = vpop.trf.xlu0
        %v1069 = vsel %vm957, %v1052, 0
        %1071 = vmatpush.msra.mxu0 0.0
        %1072 = vmatpush.msra.mxu0 0.0
        %1073 = vmatpush.msra.mxu0 0.0
        %1074 = vmatpush.msra.mxu0 0.0
        %1075 = vmatpush.msra.mxu0 0.0
        %1076 = vmatpush.msra.mxu0 0.0
        %1077 = vmatpush.msra.mxu0 0.0
        %1078 = vmatpush.msra.mxu0 0.0
        %1079 = vmatpush.msra.mxu0 0.0
        %1080 = vmatpush.msra.mxu0 0.0
        %1081 = vmatpush.msra.mxu0 0.0
        %1082 = vmatpush.msra.mxu0 0.0
        %1083 = vmatpush.msra.mxu0 0.0
        %1084 = vmatpush.msra.mxu0 0.0
        %1085 = vmatpush.msra.mxu0 0.0
        %1086 = vmatpush.msra.mxu0 %v915
        %1087 = vmatmul.f32.gmra.mxu0 %v1069
        %v1088 = vpop.f32.mrf.mxu0
        %v1089 = vadd.f32 %v924, %v1088
        %1090 = vdwg.mxu0
        %1091 = vxpose.xlu0.b32.start [1/16] %v912, 128
        %1092 = vxpose.xlu0.b32.cont [2/16] 0.0, 128
        %1093 = vxpose.xlu0.b32.cont [3/16] 0.0, 128
        %1094 = vxpose.xlu0.b32.cont [4/16] 0.0, 128
        %1095 = vxpose.xlu0.b32.cont [5/16] 0.0, 128
        %1096 = vxpose.xlu0.b32.cont [6/16] 0.0, 128
        %1097 = vxpose.xlu0.b32.cont [7/16] 0.0, 128
        %1098 = vxpose.xlu0.b32.cont [8/16] 0.0, 128
        %1099 = vxpose.xlu0.b32.cont [9/16] 0.0, 128
        %1100 = vxpose.xlu0.b32.cont [10/16] 0.0, 128
        %1101 = vxpose.xlu0.b32.cont [11/16] 0.0, 128
        %1102 = vxpose.xlu0.b32.cont [12/16] 0.0, 128
        %1103 = vxpose.xlu0.b32.cont [13/16] 0.0, 128
        %1104 = vxpose.xlu0.b32.cont [14/16] 0.0, 128
        %1105 = vxpose.xlu0.b32.cont [15/16] 0.0, 128
        %1106 = vxpose.xlu0.b32.end [16/16] 0.0, 128
        %v1107 = vpop.trf.xlu0
        %v1108 = vpop.trf.xlu0
        %v1109 = vpop.trf.xlu0
        %v1110 = vpop.trf.xlu0
        %v1111 = vpop.trf.xlu0
        %v1112 = vpop.trf.xlu0
        %v1113 = vpop.trf.xlu0
        %v1114 = vpop.trf.xlu0
        %v1115 = vpop.trf.xlu0
        %v1116 = vpop.trf.xlu0
        %v1117 = vpop.trf.xlu0
        %v1118 = vpop.trf.xlu0
        %v1119 = vpop.trf.xlu0
        %v1120 = vpop.trf.xlu0
        %v1121 = vpop.trf.xlu0
        %v1122 = vpop.trf.xlu0
        %v1124 = vsel %vm957, %v1107, 0
        %1126 = vmatpush.msra.mxu0 0.0
        %1127 = vmatpush.msra.mxu0 0.0
        %1128 = vmatpush.msra.mxu0 0.0
        %1129 = vmatpush.msra.mxu0 0.0
        %1130 = vmatpush.msra.mxu0 0.0
        %1131 = vmatpush.msra.mxu0 0.0
        %1132 = vmatpush.msra.mxu0 0.0
        %1133 = vmatpush.msra.mxu0 0.0
        %1134 = vmatpush.msra.mxu0 0.0
        %1135 = vmatpush.msra.mxu0 0.0
        %1136 = vmatpush.msra.mxu0 0.0
        %1137 = vmatpush.msra.mxu0 0.0
        %1138 = vmatpush.msra.mxu0 0.0
        %1139 = vmatpush.msra.mxu0 0.0
        %1140 = vmatpush.msra.mxu0 0.0
        %1141 = vmatpush.msra.mxu0 %v916
        %1142 = vmatmul.f32.gmra.mxu0 %v1124
        %v1143 = vpop.f32.mrf.mxu0
        %v1144 = vadd.f32 %v924, %v1143
        %1145 = vdwg.mxu0
        %v1146 = vsel %vm957, %v979, -inf
        %1147 = vmax.xlane.f32.xlu0 %v1146
        %v1148 = vpop.xlane.xlu0 %1147
        %v1149 = vsel %vm957, %v1034, -inf
        %1150 = vmax.xlane.f32.xlu0 %v1149
        %v1151 = vpop.xlane.xlu0 %1150
        %v1152 = vsel %vm957, %v1089, -inf
        %1153 = vmax.xlane.f32.xlu0 %v1152
        %v1154 = vpop.xlane.xlu0 %1153
        %v1155 = vsel %vm957, %v1144, -inf
        %1156 = vmax.xlane.f32.xlu0 %v1155
        %v1157 = vpop.xlane.xlu0 %1156
        %v1158 = vsub.f32 %v979, %v1148
        %v1159 = vsub.f32 %v1034, %v1151
        %v1160 = vsub.f32 %v1089, %v1154
        %v1161 = vsub.f32 %v1144, %v1157
        %v1162 = vmul.f32 %v1158, 1.442695
        %v1163 = vpow.pop %v1162
        %v1164 = vmul.f32 %v1159, 1.442695
        %v1165 = vpow.pop %v1164
        %v1166 = vmul.f32 %v1160, 1.442695
        %v1167 = vpow.pop %v1166
        %v1168 = vmul.f32 %v1161, 1.442695
        %v1169 = vpow.pop %v1168
        %v1170 = vsel %vm957, %v1163, 0.0
        %1171 = vadd.xlane.f32.xlu0 %v1170
        %v1172 = vpop.xlane.xlu0 %1171
        %v1173 = vsel %vm957, %v1165, 0.0
        %1174 = vadd.xlane.f32.xlu0 %v1173
        %v1175 = vpop.xlane.xlu0 %1174
        %v1176 = vsel %vm957, %v1167, 0.0
        %1177 = vadd.xlane.f32.xlu0 %v1176
        %v1178 = vpop.xlane.xlu0 %1177
        %v1179 = vsel %vm957, %v1169, 0.0
        %1180 = vadd.xlane.f32.xlu0 %v1179
        %v1181 = vpop.xlane.xlu0 %1180
        %v1182 = vrcp.pop %v1172
        %v1183 = vmul.f32 %v1172, %v1182
        %v1184 = vsub.f32 1.0, %v1183
        %v1185 = vmul.f32 %v1182, %v1184
        %v1186 = vadd.f32 %v1182, %v1185
        %vm1187 = vweird.f32 %v1172
        %vm1188 = vweird.f32 %v1182
        %vm1189 = vmor %vm1187, %vm1188
        %v1190 = vsel %vm1189, %v1182, %v1186
        %v1191 = vand.u32 2147483647, %v1172
        %vm1192 = vcmp.eq.f32.partialorder %v1191, 8.507059e+37
        %v1193 = vand.u32 %v1172, 2147483648
        %v1194 = vor.u32 1.1754944e-38, %v1193
        %v1195 = vsel %vm1192, %v1194, %v1190
        %v1196 = vmul.f32 %v1163, %v1195
        %v1197 = vrcp.pop %v1175
        %v1198 = vmul.f32 %v1175, %v1197
        %v1199 = vsub.f32 1.0, %v1198
        %v1200 = vmul.f32 %v1197, %v1199
        %v1201 = vadd.f32 %v1197, %v1200
        %vm1202 = vweird.f32 %v1175
        %vm1203 = vweird.f32 %v1197
        %vm1204 = vmor %vm1202, %vm1203
        %v1205 = vsel %vm1204, %v1197, %v1201
        %v1206 = vand.u32 2147483647, %v1175
        %vm1207 = vcmp.eq.f32.partialorder %v1206, 8.507059e+37
        %v1208 = vand.u32 %v1175, 2147483648
        %v1209 = vor.u32 1.1754944e-38, %v1208
        %v1210 = vsel %vm1207, %v1209, %v1205
        %v1211 = vmul.f32 %v1165, %v1210
        %v1212 = vrcp.pop %v1178
        %v1213 = vmul.f32 %v1178, %v1212
        %v1214 = vsub.f32 1.0, %v1213
        %v1215 = vmul.f32 %v1212, %v1214
        %v1216 = vadd.f32 %v1212, %v1215
        %vm1217 = vweird.f32 %v1178
        %vm1218 = vweird.f32 %v1212
        %vm1219 = vmor %vm1217, %vm1218
        %v1220 = vsel %vm1219, %v1212, %v1216
        %v1221 = vand.u32 2147483647, %v1178
        %vm1222 = vcmp.eq.f32.partialorder %v1221, 8.507059e+37
        %v1223 = vand.u32 %v1178, 2147483648
        %v1224 = vor.u32 1.1754944e-38, %v1223
        %v1225 = vsel %vm1222, %v1224, %v1220
        %v1226 = vmul.f32 %v1167, %v1225
        %v1227 = vrcp.pop %v1181
        %v1228 = vmul.f32 %v1181, %v1227
        %v1229 = vsub.f32 1.0, %v1228
        %v1230 = vmul.f32 %v1227, %v1229
        %v1231 = vadd.f32 %v1227, %v1230
        %vm1232 = vweird.f32 %v1181
        %vm1233 = vweird.f32 %v1227
        %vm1234 = vmor %vm1232, %vm1233
        %v1235 = vsel %vm1234, %v1227, %v1231
        %v1236 = vand.u32 2147483647, %v1181
        %vm1237 = vcmp.eq.f32.partialorder %v1236, 8.507059e+37
        %v1238 = vand.u32 %v1181, 2147483648
        %v1239 = vor.u32 1.1754944e-38, %v1238
        %v1240 = vsel %vm1237, %v1239, %v1235
        %v1241 = vmul.f32 %v1169, %v1240
        %1242 = vst.msk [vmem:[%s674] sm:$0xff] %vm957, %v1196
        %1243 = vst.msk [vmem:[%s674 + $0x8] sm:$0xff] %vm957, %v1211
        %1244 = vst.msk [vmem:[%s674 + $0x10] sm:$0xff] %vm957, %v1226
        %1245 = vst.msk [vmem:[%s674 + $0x18] sm:$0xff] %vm957, %v1241
        %v1247 = vsel %vm957, %v917, 0
        %v1250 = vsel %vm957, %v1196, 0
        %1252 = vmatpush.xpose.msra.mxu0 0.0
        %1253 = vmatpush.xpose.msra.mxu0 0.0
        %1254 = vmatpush.xpose.msra.mxu0 0.0
        %1255 = vmatpush.xpose.msra.mxu0 0.0
        %1256 = vmatpush.xpose.msra.mxu0 0.0
        %1257 = vmatpush.xpose.msra.mxu0 0.0
        %1258 = vmatpush.xpose.msra.mxu0 0.0
        %1259 = vmatpush.xpose.msra.mxu0 0.0
        %1260 = vmatpush.xpose.msra.mxu0 0.0
        %1261 = vmatpush.xpose.msra.mxu0 0.0
        %1262 = vmatpush.xpose.msra.mxu0 0.0
        %1263 = vmatpush.xpose.msra.mxu0 0.0
        %1264 = vmatpush.xpose.msra.mxu0 0.0
        %1265 = vmatpush.xpose.msra.mxu0 0.0
        %1266 = vmatpush.xpose.msra.mxu0 0.0
        %1267 = vmatpush.xpose.msra.mxu0 %v1250
        %1268 = vmatmul.f32.gmra.mxu0 %v1247
        %v1269 = vpop.f32.mrf.mxu0
        %v1270 = vadd.f32 0.0, %v1269
        %1271 = vdwg.mxu0
        %v1273 = vsel %vm957, %v918, 0
        %v1276 = vsel %vm957, %v1211, 0
        %1278 = vmatpush.xpose.msra.mxu0 0.0
        %1279 = vmatpush.xpose.msra.mxu0 0.0
        %1280 = vmatpush.xpose.msra.mxu0 0.0
        %1281 = vmatpush.xpose.msra.mxu0 0.0
        %1282 = vmatpush.xpose.msra.mxu0 0.0
        %1283 = vmatpush.xpose.msra.mxu0 0.0
        %1284 = vmatpush.xpose.msra.mxu0 0.0
        %1285 = vmatpush.xpose.msra.mxu0 0.0
        %1286 = vmatpush.xpose.msra.mxu0 0.0
        %1287 = vmatpush.xpose.msra.mxu0 0.0
        %1288 = vmatpush.xpose.msra.mxu0 0.0
        %1289 = vmatpush.xpose.msra.mxu0 0.0
        %1290 = vmatpush.xpose.msra.mxu0 0.0
        %1291 = vmatpush.xpose.msra.mxu0 0.0
        %1292 = vmatpush.xpose.msra.mxu0 0.0
        %1293 = vmatpush.xpose.msra.mxu0 %v1276
        %1294 = vmatmul.f32.gmra.mxu0 %v1273
        %v1295 = vpop.f32.mrf.mxu0
        %v1296 = vadd.f32 0.0, %v1295
        %1297 = vdwg.mxu0
        %v1299 = vsel %vm957, %v919, 0
        %v1302 = vsel %vm957, %v1226, 0
        %1304 = vmatpush.xpose.msra.mxu0 0.0
        %1305 = vmatpush.xpose.msra.mxu0 0.0
        %1306 = vmatpush.xpose.msra.mxu0 0.0
        %1307 = vmatpush.xpose.msra.mxu0 0.0
        %1308 = vmatpush.xpose.msra.mxu0 0.0
        %1309 = vmatpush.xpose.msra.mxu0 0.0
        %1310 = vmatpush.xpose.msra.mxu0 0.0
        %1311 = vmatpush.xpose.msra.mxu0 0.0
        %1312 = vmatpush.xpose.msra.mxu0 0.0
        %1313 = vmatpush.xpose.msra.mxu0 0.0
        %1314 = vmatpush.xpose.msra.mxu0 0.0
        %1315 = vmatpush.xpose.msra.mxu0 0.0
        %1316 = vmatpush.xpose.msra.mxu0 0.0
        %1317 = vmatpush.xpose.msra.mxu0 0.0
        %1318 = vmatpush.xpose.msra.mxu0 0.0
        %1319 = vmatpush.xpose.msra.mxu0 %v1302
        %1320 = vmatmul.f32.gmra.mxu0 %v1299
        %v1321 = vpop.f32.mrf.mxu0
        %v1322 = vadd.f32 0.0, %v1321
        %1323 = vdwg.mxu0
        %v1325 = vsel %vm957, %v920, 0
        %v1328 = vsel %vm957, %v1241, 0
        %1330 = vmatpush.xpose.msra.mxu0 0.0
        %1331 = vmatpush.xpose.msra.mxu0 0.0
        %1332 = vmatpush.xpose.msra.mxu0 0.0
        %1333 = vmatpush.xpose.msra.mxu0 0.0
        %1334 = vmatpush.xpose.msra.mxu0 0.0
        %1335 = vmatpush.xpose.msra.mxu0 0.0
        %1336 = vmatpush.xpose.msra.mxu0 0.0
        %1337 = vmatpush.xpose.msra.mxu0 0.0
        %1338 = vmatpush.xpose.msra.mxu0 0.0
        %1339 = vmatpush.xpose.msra.mxu0 0.0
        %1340 = vmatpush.xpose.msra.mxu0 0.0
        %1341 = vmatpush.xpose.msra.mxu0 0.0
        %1342 = vmatpush.xpose.msra.mxu0 0.0
        %1343 = vmatpush.xpose.msra.mxu0 0.0
        %1344 = vmatpush.xpose.msra.mxu0 0.0
        %1345 = vmatpush.xpose.msra.mxu0 %v1328
        %1346 = vmatmul.f32.gmra.mxu0 %v1325
        %v1347 = vpop.f32.mrf.mxu0
        %v1348 = vadd.f32 0.0, %v1347
        %1349 = vdwg.mxu0
        %v1350 = vld [vmem:[#allocation12] sm:$0xff]
        %v1351 = vld [vmem:[#allocation12 + $0x8] sm:$0xff]
        %v1352 = vld [vmem:[#allocation12 + $0x10] sm:$0xff]
        %v1353 = vld [vmem:[#allocation12 + $0x18] sm:$0xff]
        %v1354 = vld [vmem:[%s11] sm:$0x1]
        %v1356 = vperm.slane %v1354, 0
        %1358 = vxpose.xlu0.b32.start [1/16] %v1270, 128
        %1359 = vxpose.xlu0.b32.cont [2/16] %v1296, 128
        %1360 = vxpose.xlu0.b32.cont [3/16] %v1322, 128
        %1361 = vxpose.xlu0.b32.cont [4/16] %v1348, 128
        %1362 = vxpose.xlu0.b32.cont [5/16] 0.0, 128
        %1363 = vxpose.xlu0.b32.cont [6/16] 0.0, 128
        %1364 = vxpose.xlu0.b32.cont [7/16] 0.0, 128
        %1365 = vxpose.xlu0.b32.cont [8/16] 0.0, 128
        %1366 = vxpose.xlu0.b32.cont [9/16] 0.0, 128
        %1367 = vxpose.xlu0.b32.cont [10/16] 0.0, 128
        %1368 = vxpose.xlu0.b32.cont [11/16] 0.0, 128
        %1369 = vxpose.xlu0.b32.cont [12/16] 0.0, 128
        %1370 = vxpose.xlu0.b32.cont [13/16] 0.0, 128
        %1371 = vxpose.xlu0.b32.cont [14/16] 0.0, 128
        %1372 = vxpose.xlu0.b32.cont [15/16] 0.0, 128
        %1373 = vxpose.xlu0.b32.end [16/16] 0.0, 128
        %v1374 = vpop.trf.xlu0
        %v1375 = vpop.trf.xlu0
        %v1376 = vpop.trf.xlu0
        %v1377 = vpop.trf.xlu0
        %v1378 = vpop.trf.xlu0
        %v1379 = vpop.trf.xlu0
        %v1380 = vpop.trf.xlu0
        %v1381 = vpop.trf.xlu0
        %v1382 = vpop.trf.xlu0
        %v1383 = vpop.trf.xlu0
        %v1384 = vpop.trf.xlu0
        %v1385 = vpop.trf.xlu0
        %v1386 = vpop.trf.xlu0
        %v1387 = vpop.trf.xlu0
        %v1388 = vpop.trf.xlu0
        %v1389 = vpop.trf.xlu0
        %v1391 = vsel %vm864, %v1374, 0
        %v1394 = vsel %vm864, %v1350, 0
        %v1397 = vsel %vm864, %v1351, 0
        %v1400 = vsel %vm864, %v1352, 0
        %v1403 = vsel %vm864, %v1353, 0
        %1405 = vmatpush.xpose.msra.mxu0 0.0
        %1406 = vmatpush.xpose.msra.mxu0 0.0
        %1407 = vmatpush.xpose.msra.mxu0 0.0
        %1408 = vmatpush.xpose.msra.mxu0 0.0
        %1409 = vmatpush.xpose.msra.mxu0 0.0
        %1410 = vmatpush.xpose.msra.mxu0 0.0
        %1411 = vmatpush.xpose.msra.mxu0 0.0
        %1412 = vmatpush.xpose.msra.mxu0 0.0
        %1413 = vmatpush.xpose.msra.mxu0 0.0
        %1414 = vmatpush.xpose.msra.mxu0 0.0
        %1415 = vmatpush.xpose.msra.mxu0 0.0
        %1416 = vmatpush.xpose.msra.mxu0 0.0
        %1417 = vmatpush.xpose.msra.mxu0 %v1403
        %1418 = vmatpush.xpose.msra.mxu0 %v1400
        %1419 = vmatpush.xpose.msra.mxu0 %v1397
        %1420 = vmatpush.xpose.msra.mxu0 %v1394
        %1421 = vmatmul.f32.gmra.mxu0 %v1391
        %v1422 = vpop.f32.mrf.mxu0
        %v1423 = vadd.f32 %v1356, %v1422
        %1424 = vdwg.mxu0
        %v1425 = vadd.f32 %v1423, %v835
        %v1426 = vsel %vm864, %v1425, 0.0
        %1427 = vadd.xlane.f32.xlu0 %v1426
        %v1428 = vpop.xlane.xlu0 %1427
        %v1429 = vrcp.pop 32.0
        %v1430 = vmul.f32 32.0, %v1429
        %v1431 = vsub.f32 1.0, %v1430
        %v1432 = vmul.f32 %v1429, %v1431
        %v1433 = vadd.f32 %v1429, %v1432
        %vm1434 = vweird.f32 %v1429
        %v1435 = vsel %vm1434, %v1429, %v1433
        %v1436 = vmul.f32 %v1428, %v1435
        %v1437 = vsub.f32 %v1425, %v1436
        %v1438 = vmul.f32 %v1437, %v1437
        %v1439 = vsel %vm864, %v1438, 0.0
        %1440 = vadd.xlane.f32.xlu0 %v1439
        %v1441 = vpop.xlane.xlu0 %1440
        %v1442 = vmul.f32 %v1441, %v1435
        %v1443 = vadd.f32 %v1442, 1e-05
        %v1444 = vrsqrt.pop %v1443
        %v1445 = vmul.f32 %v1444, %v1443
        %v1446 = vmul.f32 %v1445, %v1444
        %v1447 = vmul.f32 0.5, %v1446
        %v1448 = vsub.f32 1.5, %v1447
        %v1449 = vmul.f32 %v1444, %v1448
        %vm1450 = vweird.f32 %v1443
        %vm1451 = vweird.f32 %v1444
        %vm1452 = vmor %vm1450, %vm1451
        %v1453 = vsel %vm1452, %v1444, %v1449
        %v1454 = vmul.f32 %v1437, %v1453
        %v1455 = vld [vmem:[%s12] sm:$0x1]
        %v1457 = vperm.slane %v1455, 0
        %v1459 = vmul.f32 %v1454, %v1457
        %v1460 = vld [vmem:[%s13] sm:$0x1]
        %v1462 = vperm.slane %v1460, 0
        %v1464 = vadd.f32 %v1459, %v1462
        %1465 = vst.msk [vmem:[%s667] sm:$0xff] %vm864, %v1464
        %s1466 = sand.u32 %s382, 1
        %s1467 = scalar_lea.sflag [#allocation6], %s1466
        %s1468 = sand.u32 %s382, 1
        %s1469 = smul.addr %s1468, 8
        %s1470 = scalar_lea.vmem [#allocation13], %s1469
        %s1471 = sand.u32 %s410, 1
        %s1472 = scalar_lea.sflag [#allocation15], %s1471
        %s1473 = sand.u32 %s410, 1
        %s1474 = smul.addr %s1473, 32
        %s1475 = scalar_lea.vmem [#allocation14], %s1474
        // Predicated region
        $region101: #{tpu_custom_call.1} parent=75 // pred_check
          %p1476 = pneg %p392
        $region102: #{tpu_custom_call.1} parent=75 // pred_check_branch
          %1478 = sbr.rel (%p1476) target = $region104
        $region103: #{tpu_custom_call.1} parent=75 // pred_region
          %1480 = vsyncadd %s1467, 0
          %s1481 = sadd.s32 %s47, %s46
          %s1482 = smul.addr %s1481, 8
          %s1483 = scalar_lea.hbm %s14, %s1482
          %s1485 = sshll.u32 %s1470, 4
          %s1486 = int_to_ptr.vmem [resolvable:$true] %s1485
          %s1487 = sshll.u32 %s1483, 4
          %s1488 = int_to_ptr.hbm [resolvable:$true] %s1487
          %1490 = dma.vmem_to_hbm [thread:$0]  %s1486, 128, %s1488, %s1467
        $region104: #{tpu_custom_call.1} parent=75 // pred_fallthru
          _
        // Predicated region
        $region105: #{tpu_custom_call.1} parent=75 // pred_check
          %p1491 = pneg %p420
        $region106: #{tpu_custom_call.1} parent=75 // pred_check_branch
          %1493 = sbr.rel (%p1491) target = $region108
        $region107: #{tpu_custom_call.1} parent=75 // pred_region
          %1495 = vsyncadd %s1472, 0
          %s1496 = sadd.s32 %s47, %s46
          %s1497 = smul.addr %s1496, 8
          %s1498 = scalar_lea.hbm %s15, %s1497
          %s1499 = sshll.u32 %s1475, 4
          %s1500 = int_to_ptr.vmem [resolvable:$true] %s1499
          %s1501 = sshll.u32 %s1498, 4
          %s1502 = int_to_ptr.hbm [resolvable:$true] %s1501
          %1507 = dma.vmem_to_hbm [thread:$0]  %s1500, 512, %s1502, %s1472, 128, 256, 8
        $region108: #{tpu_custom_call.1} parent=75 // pred_fallthru
          _
      $region76: #{tpu_custom_call.1} parent=5 // pred_fallthru
        _
      %p1508 = scmp.le.s32.totalorder 2, %s37
      // Predicated region
      $region109: #{tpu_custom_call.1} parent=5 // pred_check
        %p1509 = pneg %p1508
      $region110: #{tpu_custom_call.1} parent=5 // pred_check_branch
        %1511 = sbr.rel (%p1509) target = $region112
      $region111: #{tpu_custom_call.1} parent=5 // pred_region
        %s1512 = ssub.s32 %s37, 2
        // Predicated region
        $region113: #{tpu_custom_call.1} parent=111 // pred_check
          %p1513 = pneg %p398
        $region114: #{tpu_custom_call.1} parent=111 // pred_check_branch
          %1515 = sbr.rel (%p1513) target = $region116
        $region115: #{tpu_custom_call.1} parent=111 // pred_region
          %s1516 = sand.u32 %s383, 1
          %s1517 = scalar_lea.sflag [#allocation6], %s1516
          %s1518 = sand.u32 %s383, 1
          %s1519 = smul.addr %s1518, 8
          %s1520 = scalar_lea.vmem [#allocation13], %s1519
          %1522 = dma.done %s1517, 128
        $region116: #{tpu_custom_call.1} parent=111 // pred_fallthru
          _
        // Predicated region
        $region117: #{tpu_custom_call.1} parent=111 // pred_check
          %p1523 = pneg %p426
        $region118: #{tpu_custom_call.1} parent=111 // pred_check_branch
          %1525 = sbr.rel (%p1523) target = $region120
        $region119: #{tpu_custom_call.1} parent=111 // pred_region
          %s1526 = sand.u32 %s411, 1
          %s1527 = scalar_lea.sflag [#allocation15], %s1526
          %s1528 = sand.u32 %s411, 1
          %s1529 = smul.addr %s1528, 32
          %s1530 = scalar_lea.vmem [#allocation14], %s1529
          %1532 = dma.done %s1527, 512
        $region120: #{tpu_custom_call.1} parent=111 // pred_fallthru
          _
      $region112: #{tpu_custom_call.1} parent=5 // pred_fallthru
        _
    $region6: #{tpu_custom_call.1} parent=1 // loop_footer
      %s41 = sadd.s32 1, %s37
    $region7: #{tpu_custom_call.1} parent=1 // loop_footer_branch
      %36 = sbr.rel target = $region3
    $region8: #{tpu_custom_call.1} parent=1 // loop_exit
      _
    %1533 = vsyncpa [#allocation5], 1
    %s1534 = scalar_lea.sflag [#allocation5], 1
    %1535 = vsyncpa %s1534, 1
    %1536 = vsyncpa [#allocation8], 1
    %s1537 = scalar_lea.sflag [#allocation8], 1
    %1538 = vsyncpa %s1537, 1
    %1539 = vsyncpa [#allocation11], 1
    %s1540 = scalar_lea.sflag [#allocation11], 1
    %1541 = vsyncpa %s1540, 1
    %1542 = vsyncpa [#allocation6], 1
    %s1543 = scalar_lea.sflag [#allocation6], 1
    %1544 = vsyncpa %s1543, 1
    %1545 = vsyncpa [#allocation15], 1
    %s1546 = scalar_lea.sflag [#allocation15], 1
    %1547 = vsyncpa %s1546, 1

</llo_original>
